<compile_context>
chip_gen: v6e
topology: v6e:2x2x1
jax: 0.10.0
libtpu: 0.0.40
codegen_flags: <defaults>
</compile_context>

<pallas_src>
import functools
import math

import jax
import jax.numpy as jnp
from jax import lax
from jax.experimental import pallas as pl
from jax.experimental.pallas import tpu as pltpu

KH = KW = 7
PAD = 3


# --------------------------------------------------------------------------- #
# In-kernel helpers
# --------------------------------------------------------------------------- #
def _roll(v, shift, axis, size):
    """Circular roll by a static shift; skips the op when it is a no-op."""
    s = shift % size
    if s == 0:
        return v
    return pltpu.roll(v, shift=s, axis=axis)


def _accum_channels(x_ref, off, CW, s, m, cc_lo, cc_hi, chan_base, C, masked):
    """Running sum/max over channels [cc_lo, cc_hi) of the current lane chunk.

    `masked` handles a ragged last channel tile (OOB block rows are selected
    away with jnp.where, never touched arithmetically).
    """

    def one(cc, s, m):
        xc = x_ref[cc, :, pl.ds(off, CW)].astype(jnp.float32)
        if masked:
            valid = (chan_base + cc) < C
            s = s + jnp.where(valid, xc, 0.0)
            m = jnp.maximum(m, jnp.where(valid, xc, -jnp.inf))
        else:
            s = s + xc
            m = jnp.maximum(m, xc)
        return s, m

    n = cc_hi - cc_lo
    if n <= 0:
        return s, m
    if n <= 16:                                   # small: fully unrolled
        for cc in range(cc_lo, cc_hi):
            s, m = one(cc, s, m)
        return s, m
    # large: partial unroll keeps the 3 vld slots fed without code blow-up
    return lax.fori_loop(cc_lo, cc_hi, lambda cc, c: one(cc, *c), (s, m),
                         unroll=8)


def _conv7x7_sigmoid(planes, w_ref, b_ref, row, colw, H, W, CW):
    """7x7, stride 1, zero-pad 3, 2->1 channel conv + bias + sigmoid on one chunk.

    planes = (mean, max), each (H, CW) f32 register resident.  Sublane rolls
    provide the H shifts, lane rolls the W shifts; iota masks provide the zero
    padding (and also kill any cross-batch / chunk-edge wrap, which lands only
    on padded positions because CW is a multiple of W).
    """
    acc_kw = [None] * KW                          # 7 register-resident accumulators
    for kh in range(KH):
        dh = kh - PAD
        for c in range(2):
            q = _roll(planes[c], -dh, 0, H)       # sublane shift (XLU)
            if dh != 0:
                hmask = (row >= -dh) & (row < H - dh)
                q = jnp.where(hmask, q, 0.0)      # zero padding along H
            base = c * KH * KW + kh * KW
            for kw in range(KW):
                t = w_ref[base + kw] * q          # scalar (SMEM) * vreg plane
                acc_kw[kw] = t if acc_kw[kw] is None else acc_kw[kw] + t

    acc = acc_kw[PAD] + b_ref[0]                  # centre tap + bias (review #9)
    for kw in range(KW):
        if kw == PAD:
            continue
        dw = kw - PAD
        t = _roll(acc_kw[kw], -dw, 1, CW)         # lane shift (XLU)
        wmask = (colw >= -dw) & (colw < W - dw)   # zero padding along W
        acc = acc + jnp.where(wmask, t, 0.0)
    return jax.nn.sigmoid(acc)                    # EUP exp path


# --------------------------------------------------------------------------- #
# Kernel
# --------------------------------------------------------------------------- #
def sam_kernel(w_ref, b_ref, x_ref, o_ref, *scratch,
               C, c_tile, H, W, NBW, CW, n_ct):
    # x_ref: (c_tile, H, NBW) VMEM tile; lanes pack batch elements side by side.
    # o_ref: (H, NBW).  scratch (only when n_ct > 1): (2, H, NBW) running sum/max.
    n_chunks = NBW // CW
    inv_c = 1.0 / float(C)
    # Hoisted iotas (chunk-invariant because CW is a multiple of W).
    row = lax.broadcasted_iota(jnp.int32, (H, CW), 0)
    colw = lax.broadcasted_iota(jnp.int32, (H, CW), 1) % W

    def conv_store(off, s, m):
        out = _conv7x7_sigmoid((s * inv_c, m), w_ref, b_ref, row, colw, H, W, CW)
        o_ref[:, pl.ds(off, CW)] = out

    def for_chunks(body):
        if n_chunks == 1:
            body(0)
        else:
            @pl.loop(0, n_chunks)
            def _(j):
                body(pl.multiple_of(j * CW, CW))

    if n_ct == 1:
        # Fully fused path: per lane chunk, reduce over all C channels in
        # registers, then conv + sigmoid + single store.  No VMEM scratch.
        def chunk(off):
            x0 = x_ref[0, :, pl.ds(off, CW)].astype(jnp.float32)
            s, m = _accum_channels(x_ref, off, CW, x0, x0, 1, C, 0, C, False)
            conv_store(off, s, m)

        for_chunks(chunk)
        return

    # ---- channel-tiled path (large C): running sum/max in VMEM scratch ---- #
    scr_ref = scratch[0]
    k = pl.program_id(1)
    chan_base = k * c_tile
    last_ragged = (C % c_tile) != 0

    @pl.when(k == 0)
    def _init():
        scr_ref[0, :, :] = jnp.zeros((H, NBW), jnp.float32)
        scr_ref[1, :, :] = jnp.full((H, NBW), -jnp.inf, jnp.float32)

    @pl.when(k < n_ct - 1)
    def _accumulate():
        def chunk(off):
            s = scr_ref[0, :, pl.ds(off, CW)]
            m = scr_ref[1, :, pl.ds(off, CW)]
            s, m = _accum_channels(x_ref, off, CW, s, m, 0, c_tile,
                                   chan_base, C, False)
            scr_ref[0, :, pl.ds(off, CW)] = s
            scr_ref[1, :, pl.ds(off, CW)] = m

        for_chunks(chunk)

    @pl.when(k == n_ct - 1)
    def _finalize():
        def chunk(off):
            s = scr_ref[0, :, pl.ds(off, CW)]
            m = scr_ref[1, :, pl.ds(off, CW)]
            s, m = _accum_channels(x_ref, off, CW, s, m, 0, c_tile,
                                   chan_base, C, last_ragged)
            conv_store(off, s, m)

        for_chunks(chunk)


# --------------------------------------------------------------------------- #
# Tiling heuristics
# --------------------------------------------------------------------------- #
def _vmem_budget_bytes():
    cap = 64 * 1024 * 1024
    try:
        cap = int(pltpu.get_tpu_info().vmem_capacity_bytes)
    except Exception:
        pass
    # >= 16 MiB headroom for compiler-internal scratch; <= 48 MiB total
    # (safe on v7x's 64 MiB/TC, plenty on v5e/v6e's 128 MiB).
    return max(16 * 1024 * 1024, min(48 * 1024 * 1024, cap - 16 * 1024 * 1024))


def _chunk_batches(H, W):
    """Batches per in-kernel lane chunk (chunk width must be a multiple of W)."""
    lane_q = 128 // math.gcd(128, W)              # min batches for 128-aligned chunk
    # Keep an (H, CW) f32 plane chunk at <= ~4 vregs so the 7 conv accumulators
    # plus sources stay inside the 64-entry vreg file.
    cw_cap = max(W, (4096 // max(H, 1)) // W * W)
    if lane_q * W <= max(128, cw_cap):
        return lane_q
    return max(1, cw_cap // W)


def _choose_tiling(N, C, H, W, x_itemsize, cwb, budget):
    cw = cwb * W
    npad0 = pl.cdiv(N, cwb) * cwb
    groups_total = npad0 // cwb

    # Target ~1024 lanes per grid step (>=512 for HBM efficiency), whole chunks.
    tgt_groups = min(groups_total, max(1, 1024 // cw))
    # Megacore (v7x): ensure >= 2 grid steps along the parallel batch axis
    # whenever the batch is big enough to split.
    if tgt_groups >= groups_total and groups_total >= 2:
        tgt_groups = pl.cdiv(groups_total, 2)
    block_n = tgt_groups * cwb
    # Multi-block lane tiling needs a 128-aligned block width; otherwise use a
    # single full-extent block.
    if (cw % 128) != 0 and block_n < npad0:
        block_n = npad0
    nbw = block_n * W

    # Channel tile: biggest tile whose double-buffered x block (+ double-buffered
    # out block and sum/max scratch) fits ~70% of the VMEM budget.
    fixed = 2 * H * nbw * 4 + 2 * H * nbw * 4
    per_chan = 2 * H * nbw * x_itemsize
    usable = int(budget * 0.7) - fixed
    c_tile = int(max(1, min(C, usable // per_chan))) if usable >= per_chan else 1
    return block_n, c_tile


# --------------------------------------------------------------------------- #
# Wrapper
# --------------------------------------------------------------------------- #
def spatial_attention(x, w, b, *, block_n=None, c_tile=None):
    """x: (N, C, H, W) f32/bf16; w: (1, 2, 7, 7) OIHW; b: (1,).

    Returns sigmoid(conv7x7([mean_c(x), max_c(x)]) + b) with shape (N, 1, H, W).
    """
    N, C, H, W = x.shape
    w_flat = jnp.asarray(w, jnp.float32).reshape(-1)      # (98,) scalar table
    b_vec = jnp.asarray(b, jnp.float32).reshape(-1)       # (1,)

    budget = _vmem_budget_bytes()
    cwb = _chunk_batches(H, W)                             # batches per lane chunk
    cw = cwb * W

    auto_bn, auto_ct = _choose_tiling(N, C, H, W, jnp.dtype(x.dtype).itemsize,
                                      cwb, budget)
    block_n = auto_bn if block_n is None else pl.cdiv(block_n, cwb) * cwb
    c_tile = auto_ct if c_tile is None else c_tile
    c_tile = int(max(1, min(C, c_tile)))

    Np = pl.cdiv(N, block_n) * block_n
    if Np != N:
        x = jnp.pad(x, ((0, Np - N), (0, 0), (0, 0), (0, 0)))

    nbw = block_n * W
    nb = Np // block_n
    n_ct = pl.cdiv(C, c_tile)

    # Lane-dense layout: fold batch into the lane axis (wrapper-side plumbing).
    xt = jnp.transpose(x, (1, 2, 0, 3)).reshape(C, H, Np * W)

    kernel = functools.partial(sam_kernel, C=C, c_tile=c_tile, H=H, W=W,
                               NBW=nbw, CW=cw, n_ct=n_ct)

    scratch_shapes = []
    if n_ct > 1:
        scratch_shapes.append(pltpu.VMEM((2, H, nbw), jnp.float32))

    out = pl.pallas_call(
        kernel,
        out_shape=jax.ShapeDtypeStruct((H, Np * W), jnp.float32),
        grid=(nb, n_ct),
        in_specs=[
            pl.BlockSpec(memory_space=pltpu.MemorySpace.SMEM),     # conv weights
            pl.BlockSpec(memory_space=pltpu.MemorySpace.SMEM),     # bias
            pl.BlockSpec((c_tile, H, nbw), lambda i, k: (k, 0, i)),  # x block
        ],
        out_specs=pl.BlockSpec((H, nbw), lambda i, k: (0, i)),
        scratch_shapes=scratch_shapes,
        compiler_params=pltpu.CompilerParams(
            dimension_semantics=("parallel", "arbitrary"),
            vmem_limit_bytes=int(budget),
        ),
    )(w_flat, b_vec, xt)

    # (H, Np*W) -> (N, 1, H, W)
    return out.reshape(H, Np, W).transpose(1, 0, 2)[:N].reshape(N, 1, H, W)


# --------------------------------------------------------------------------- #
# Self-test
# --------------------------------------------------------------------------- #
if __name__ == "__main__":
    key = jax.random.PRNGKey(0)
    k1, k2, k3, k4 = jax.random.split(key, 4)

    N, C, H, W = 2, 4, 16, 16
    x = jax.random.normal(k1, (N, C, H, W), dtype=jnp.float32)

    # Deterministic parameter init (mimics PyTorch Conv2d default uniform bounds).
    fan_in = 2 * KH * KW
    bound = 1.0 / math.sqrt(fan_in)
    w = jax.random.uniform(k2, (1, 2, KH, KW), jnp.float32, minval=-bound, maxval=bound)
    b = jax.random.uniform(k3, (1,), jnp.float32, minval=-bound, maxval=bound)

    def reference(x, w, b):
        avg = jnp.mean(x, axis=1, keepdims=True)
        mx = jnp.max(x, axis=1, keepdims=True)
        cat = jnp.concatenate([avg, mx], axis=1)
        y = jax.lax.conv_general_dilated(
            cat, w, window_strides=(1, 1),
            padding=((PAD, PAD), (PAD, PAD)),
            dimension_numbers=("NCHW", "OIHW", "NCHW"))
        return jax.nn.sigmoid(y + b.reshape(1, 1, 1, 1))

    out = jax.block_until_ready(spatial_attention(x, w, b))
    assert out.shape == (N, 1, H, W), out.shape
    err = float(jnp.max(jnp.abs(out - reference(x, w, b))))
    assert err < 2e-5, err

    # Also exercise the channel-tiled (multi c-step) + multi-batch-block path.
    N2, C2 = 10, 5
    x2 = jax.random.normal(k4, (N2, C2, H, W), dtype=jnp.float32)
    out2 = jax.block_until_ready(spatial_attention(x2, w, b, block_n=8, c_tile=2))
    err2 = float(jnp.max(jnp.abs(out2 - reference(x2, w, b))))
    assert err2 < 2e-5, err2

    print("KERNEL_OK")
</pallas_src>

<mosaic_0001>
module attributes {stable_mosaic.version = 11 : i64} {
  func.func @sam_kernel(%arg0: i32, %arg1: i32, %arg2: memref<98xf32, #tpu.memory_space<smem>>, %arg3: memref<1xf32, #tpu.memory_space<smem>>, %arg4: memref<4x16x128xf32, #tpu.memory_space<vmem>>, %arg5: memref<16x128xf32, #tpu.memory_space<vmem>>) attributes {dimension_semantics = [#tpu.dimension_semantics<parallel>, #tpu.dimension_semantics<arbitrary>], iteration_bounds = array<i64: 1, 1>, scalar_prefetch = 0 : i64, scratch_operands = 0 : i64, tpu.core_type = #tpu.core_type<tc>, window_params = [{transform_indices = @transform_0, window_bounds = array<i64: 98>}, {transform_indices = @transform_1, window_bounds = array<i64: 1>}, {transform_indices = @transform_2, window_bounds = array<i64: 4, 16, 128>}, {transform_indices = @transform_3, window_bounds = array<i64: 16, 128>}]} {
    %0 = tpu.iota {dimensions = array<i32: 0>} : vector<16x128xi32>
    %1 = tpu.iota {dimensions = array<i32: 1>} : vector<16x128xi32>
    %c16_i32 = arith.constant 16 : i32
    %c0_i32 = arith.constant 0 : i32
    %2 = arith.cmpi eq, %c16_i32, %c0_i32 : i32
    %c1_i32 = arith.constant 1 : i32
    %3 = arith.select %2, %c1_i32, %c16_i32 : i32
    %4 = vector.broadcast %3 : i32 to vector<16x128xi32>
    %5 = arith.remsi %1, %4 : vector<16x128xi32>
    %c0_i32_0 = arith.constant 0 : i32
    %6 = vector.broadcast %c0_i32_0 : i32 to vector<16x128xi32>
    %7 = arith.cmpi ne, %5, %6 : vector<16x128xi32>
    %c0_i32_1 = arith.constant 0 : i32
    %8 = vector.broadcast %c0_i32_1 : i32 to vector<16x128xi32>
    %9 = arith.cmpi slt, %5, %8 : vector<16x128xi32>
    %c0_i32_2 = arith.constant 0 : i32
    %10 = arith.cmpi slt, %3, %c0_i32_2 : i32
    %11 = vector.broadcast %10 : i1 to vector<16x128xi1>
    %12 = vector.broadcast %11 : vector<16x128xi1> to vector<16x128xi1>
    %13 = arith.xori %9, %12 : vector<16x128xi1>
    %14 = arith.andi %13, %7 : vector<16x128xi1>
    %15 = vector.broadcast %3 : i32 to vector<16x128xi32>
    %16 = arith.addi %5, %15 : vector<16x128xi32>
    %17 = arith.select %14, %16, %5 : vector<16x128xi1>, vector<16x128xi32>
    %c0 = arith.constant 0 : index
    %c0_3 = arith.constant 0 : index
    %c0_4 = arith.constant 0 : index
    %18 = vector.load %arg4[%c0, %c0_3, %c0_4] : memref<4x16x128xf32, #tpu.memory_space<vmem>>, vector<1x16x128xf32>
    %19 = vector.shape_cast %18 : vector<1x16x128xf32> to vector<16x128xf32>
    %c1 = arith.constant 1 : index
    %c0_5 = arith.constant 0 : index
    %c0_6 = arith.constant 0 : index
    %20 = vector.load %arg4[%c1, %c0_5, %c0_6] : memref<4x16x128xf32, #tpu.memory_space<vmem>>, vector<1x16x128xf32>
    %21 = vector.shape_cast %20 : vector<1x16x128xf32> to vector<16x128xf32>
    %22 = arith.addf %19, %21 : vector<16x128xf32>
    %23 = arith.maximumf %19, %21 : vector<16x128xf32>
    %c2 = arith.constant 2 : index
    %c0_7 = arith.constant 0 : index
    %c0_8 = arith.constant 0 : index
    %24 = vector.load %arg4[%c2, %c0_7, %c0_8] : memref<4x16x128xf32, #tpu.memory_space<vmem>>, vector<1x16x128xf32>
    %25 = vector.shape_cast %24 : vector<1x16x128xf32> to vector<16x128xf32>
    %26 = arith.addf %22, %25 : vector<16x128xf32>
    %27 = arith.maximumf %23, %25 : vector<16x128xf32>
    %c3 = arith.constant 3 : index
    %c0_9 = arith.constant 0 : index
    %c0_10 = arith.constant 0 : index
    %28 = vector.load %arg4[%c3, %c0_9, %c0_10] : memref<4x16x128xf32, #tpu.memory_space<vmem>>, vector<1x16x128xf32>
    %29 = vector.shape_cast %28 : vector<1x16x128xf32> to vector<16x128xf32>
    %30 = arith.addf %26, %29 : vector<16x128xf32>
    %31 = arith.maximumf %27, %29 : vector<16x128xf32>
    %cst = arith.constant 2.500000e-01 : f32
    %32 = vector.broadcast %cst : f32 to vector<16x128xf32>
    %33 = arith.mulf %30, %32 : vector<16x128xf32>
    %c3_i32 = arith.constant 3 : i32
    %34 = tpu.dynamic_rotate %33 by %c3_i32 dim 0 : vector<16x128xf32>, i32 -> vector<16x128xf32>
    %c3_i32_11 = arith.constant 3 : i32
    %35 = vector.broadcast %c3_i32_11 : i32 to vector<16x128xi32>
    %36 = arith.cmpi sge, %0, %35 : vector<16x128xi32>
    %c19_i32 = arith.constant 19 : i32
    %37 = vector.broadcast %c19_i32 : i32 to vector<16x128xi32>
    %38 = arith.cmpi slt, %0, %37 : vector<16x128xi32>
    %39 = arith.andi %36, %38 : vector<16x128xi1>
    %cst_12 = arith.constant 0.000000e+00 : f32
    %40 = vector.broadcast %cst_12 : f32 to vector<16x128xf32>
    %41 = arith.select %39, %34, %40 : vector<16x128xi1>, vector<16x128xf32>
    %c0_13 = arith.constant 0 : index
    %42 = memref.load %arg2[%c0_13] : memref<98xf32, #tpu.memory_space<smem>>
    %43 = vector.broadcast %42 : f32 to vector<16x128xf32>
    %44 = arith.mulf %43, %41 : vector<16x128xf32>
    %c1_14 = arith.constant 1 : index
    %45 = memref.load %arg2[%c1_14] : memref<98xf32, #tpu.memory_space<smem>>
    %46 = vector.broadcast %45 : f32 to vector<16x128xf32>
    %47 = arith.mulf %46, %41 : vector<16x128xf32>
    %c2_15 = arith.constant 2 : index
    %48 = memref.load %arg2[%c2_15] : memref<98xf32, #tpu.memory_space<smem>>
    %49 = vector.broadcast %48 : f32 to vector<16x128xf32>
    %50 = arith.mulf %49, %41 : vector<16x128xf32>
    %c3_16 = arith.constant 3 : index
    %51 = memref.load %arg2[%c3_16] : memref<98xf32, #tpu.memory_space<smem>>
    %52 = vector.broadcast %51 : f32 to vector<16x128xf32>
    %53 = arith.mulf %52, %41 : vector<16x128xf32>
    %c4 = arith.constant 4 : index
    %54 = memref.load %arg2[%c4] : memref<98xf32, #tpu.memory_space<smem>>
    %55 = vector.broadcast %54 : f32 to vector<16x128xf32>
    %56 = arith.mulf %55, %41 : vector<16x128xf32>
    %c5 = arith.constant 5 : index
    %57 = memref.load %arg2[%c5] : memref<98xf32, #tpu.memory_space<smem>>
    %58 = vector.broadcast %57 : f32 to vector<16x128xf32>
    %59 = arith.mulf %58, %41 : vector<16x128xf32>
    %c6 = arith.constant 6 : index
    %60 = memref.load %arg2[%c6] : memref<98xf32, #tpu.memory_space<smem>>
    %61 = vector.broadcast %60 : f32 to vector<16x128xf32>
    %62 = arith.mulf %61, %41 : vector<16x128xf32>
    %c3_i32_17 = arith.constant 3 : i32
    %63 = tpu.dynamic_rotate %31 by %c3_i32_17 dim 0 : vector<16x128xf32>, i32 -> vector<16x128xf32>
    %c3_i32_18 = arith.constant 3 : i32
    %64 = vector.broadcast %c3_i32_18 : i32 to vector<16x128xi32>
    %65 = arith.cmpi sge, %0, %64 : vector<16x128xi32>
    %c19_i32_19 = arith.constant 19 : i32
    %66 = vector.broadcast %c19_i32_19 : i32 to vector<16x128xi32>
    %67 = arith.cmpi slt, %0, %66 : vector<16x128xi32>
    %68 = arith.andi %65, %67 : vector<16x128xi1>
    %cst_20 = arith.constant 0.000000e+00 : f32
    %69 = vector.broadcast %cst_20 : f32 to vector<16x128xf32>
    %70 = arith.select %68, %63, %69 : vector<16x128xi1>, vector<16x128xf32>
    %c49 = arith.constant 49 : index
    %71 = memref.load %arg2[%c49] : memref<98xf32, #tpu.memory_space<smem>>
    %72 = vector.broadcast %71 : f32 to vector<16x128xf32>
    %73 = arith.mulf %72, %70 : vector<16x128xf32>
    %74 = arith.addf %44, %73 : vector<16x128xf32>
    %c50 = arith.constant 50 : index
    %75 = memref.load %arg2[%c50] : memref<98xf32, #tpu.memory_space<smem>>
    %76 = vector.broadcast %75 : f32 to vector<16x128xf32>
    %77 = arith.mulf %76, %70 : vector<16x128xf32>
    %78 = arith.addf %47, %77 : vector<16x128xf32>
    %c51 = arith.constant 51 : index
    %79 = memref.load %arg2[%c51] : memref<98xf32, #tpu.memory_space<smem>>
    %80 = vector.broadcast %79 : f32 to vector<16x128xf32>
    %81 = arith.mulf %80, %70 : vector<16x128xf32>
    %82 = arith.addf %50, %81 : vector<16x128xf32>
    %c52 = arith.constant 52 : index
    %83 = memref.load %arg2[%c52] : memref<98xf32, #tpu.memory_space<smem>>
    %84 = vector.broadcast %83 : f32 to vector<16x128xf32>
    %85 = arith.mulf %84, %70 : vector<16x128xf32>
    %86 = arith.addf %53, %85 : vector<16x128xf32>
    %c53 = arith.constant 53 : index
    %87 = memref.load %arg2[%c53] : memref<98xf32, #tpu.memory_space<smem>>
    %88 = vector.broadcast %87 : f32 to vector<16x128xf32>
    %89 = arith.mulf %88, %70 : vector<16x128xf32>
    %90 = arith.addf %56, %89 : vector<16x128xf32>
    %c54 = arith.constant 54 : index
    %91 = memref.load %arg2[%c54] : memref<98xf32, #tpu.memory_space<smem>>
    %92 = vector.broadcast %91 : f32 to vector<16x128xf32>
    %93 = arith.mulf %92, %70 : vector<16x128xf32>
    %94 = arith.addf %59, %93 : vector<16x128xf32>
    %c55 = arith.constant 55 : index
    %95 = memref.load %arg2[%c55] : memref<98xf32, #tpu.memory_space<smem>>
    %96 = vector.broadcast %95 : f32 to vector<16x128xf32>
    %97 = arith.mulf %96, %70 : vector<16x128xf32>
    %98 = arith.addf %62, %97 : vector<16x128xf32>
    %c2_i32 = arith.constant 2 : i32
    %99 = tpu.dynamic_rotate %33 by %c2_i32 dim 0 : vector<16x128xf32>, i32 -> vector<16x128xf32>
    %c2_i32_21 = arith.constant 2 : i32
    %100 = vector.broadcast %c2_i32_21 : i32 to vector<16x128xi32>
    %101 = arith.cmpi sge, %0, %100 : vector<16x128xi32>
    %c18_i32 = arith.constant 18 : i32
    %102 = vector.broadcast %c18_i32 : i32 to vector<16x128xi32>
    %103 = arith.cmpi slt, %0, %102 : vector<16x128xi32>
    %104 = arith.andi %101, %103 : vector<16x128xi1>
    %cst_22 = arith.constant 0.000000e+00 : f32
    %105 = vector.broadcast %cst_22 : f32 to vector<16x128xf32>
    %106 = arith.select %104, %99, %105 : vector<16x128xi1>, vector<16x128xf32>
    %c7 = arith.constant 7 : index
    %107 = memref.load %arg2[%c7] : memref<98xf32, #tpu.memory_space<smem>>
    %108 = vector.broadcast %107 : f32 to vector<16x128xf32>
    %109 = arith.mulf %108, %106 : vector<16x128xf32>
    %110 = arith.addf %74, %109 : vector<16x128xf32>
    %c8 = arith.constant 8 : index
    %111 = memref.load %arg2[%c8] : memref<98xf32, #tpu.memory_space<smem>>
    %112 = vector.broadcast %111 : f32 to vector<16x128xf32>
    %113 = arith.mulf %112, %106 : vector<16x128xf32>
    %114 = arith.addf %78, %113 : vector<16x128xf32>
    %c9 = arith.constant 9 : index
    %115 = memref.load %arg2[%c9] : memref<98xf32, #tpu.memory_space<smem>>
    %116 = vector.broadcast %115 : f32 to vector<16x128xf32>
    %117 = arith.mulf %116, %106 : vector<16x128xf32>
    %118 = arith.addf %82, %117 : vector<16x128xf32>
    %c10 = arith.constant 10 : index
    %119 = memref.load %arg2[%c10] : memref<98xf32, #tpu.memory_space<smem>>
    %120 = vector.broadcast %119 : f32 to vector<16x128xf32>
    %121 = arith.mulf %120, %106 : vector<16x128xf32>
    %122 = arith.addf %86, %121 : vector<16x128xf32>
    %c11 = arith.constant 11 : index
    %123 = memref.load %arg2[%c11] : memref<98xf32, #tpu.memory_space<smem>>
    %124 = vector.broadcast %123 : f32 to vector<16x128xf32>
    %125 = arith.mulf %124, %106 : vector<16x128xf32>
    %126 = arith.addf %90, %125 : vector<16x128xf32>
    %c12 = arith.constant 12 : index
    %127 = memref.load %arg2[%c12] : memref<98xf32, #tpu.memory_space<smem>>
    %128 = vector.broadcast %127 : f32 to vector<16x128xf32>
    %129 = arith.mulf %128, %106 : vector<16x128xf32>
    %130 = arith.addf %94, %129 : vector<16x128xf32>
    %c13 = arith.constant 13 : index
    %131 = memref.load %arg2[%c13] : memref<98xf32, #tpu.memory_space<smem>>
    %132 = vector.broadcast %131 : f32 to vector<16x128xf32>
    %133 = arith.mulf %132, %106 : vector<16x128xf32>
    %134 = arith.addf %98, %133 : vector<16x128xf32>
    %c2_i32_23 = arith.constant 2 : i32
    %135 = tpu.dynamic_rotate %31 by %c2_i32_23 dim 0 : vector<16x128xf32>, i32 -> vector<16x128xf32>
    %c2_i32_24 = arith.constant 2 : i32
    %136 = vector.broadcast %c2_i32_24 : i32 to vector<16x128xi32>
    %137 = arith.cmpi sge, %0, %136 : vector<16x128xi32>
    %c18_i32_25 = arith.constant 18 : i32
    %138 = vector.broadcast %c18_i32_25 : i32 to vector<16x128xi32>
    %139 = arith.cmpi slt, %0, %138 : vector<16x128xi32>
    %140 = arith.andi %137, %139 : vector<16x128xi1>
    %cst_26 = arith.constant 0.000000e+00 : f32
    %141 = vector.broadcast %cst_26 : f32 to vector<16x128xf32>
    %142 = arith.select %140, %135, %141 : vector<16x128xi1>, vector<16x128xf32>
    %c56 = arith.constant 56 : index
    %143 = memref.load %arg2[%c56] : memref<98xf32, #tpu.memory_space<smem>>
    %144 = vector.broadcast %143 : f32 to vector<16x128xf32>
    %145 = arith.mulf %144, %142 : vector<16x128xf32>
    %146 = arith.addf %110, %145 : vector<16x128xf32>
    %c57 = arith.constant 57 : index
    %147 = memref.load %arg2[%c57] : memref<98xf32, #tpu.memory_space<smem>>
    %148 = vector.broadcast %147 : f32 to vector<16x128xf32>
    %149 = arith.mulf %148, %142 : vector<16x128xf32>
    %150 = arith.addf %114, %149 : vector<16x128xf32>
    %c58 = arith.constant 58 : index
    %151 = memref.load %arg2[%c58] : memref<98xf32, #tpu.memory_space<smem>>
    %152 = vector.broadcast %151 : f32 to vector<16x128xf32>
    %153 = arith.mulf %152, %142 : vector<16x128xf32>
    %154 = arith.addf %118, %153 : vector<16x128xf32>
    %c59 = arith.constant 59 : index
    %155 = memref.load %arg2[%c59] : memref<98xf32, #tpu.memory_space<smem>>
    %156 = vector.broadcast %155 : f32 to vector<16x128xf32>
    %157 = arith.mulf %156, %142 : vector<16x128xf32>
    %158 = arith.addf %122, %157 : vector<16x128xf32>
    %c60 = arith.constant 60 : index
    %159 = memref.load %arg2[%c60] : memref<98xf32, #tpu.memory_space<smem>>
    %160 = vector.broadcast %159 : f32 to vector<16x128xf32>
    %161 = arith.mulf %160, %142 : vector<16x128xf32>
    %162 = arith.addf %126, %161 : vector<16x128xf32>
    %c61 = arith.constant 61 : index
    %163 = memref.load %arg2[%c61] : memref<98xf32, #tpu.memory_space<smem>>
    %164 = vector.broadcast %163 : f32 to vector<16x128xf32>
    %165 = arith.mulf %164, %142 : vector<16x128xf32>
    %166 = arith.addf %130, %165 : vector<16x128xf32>
    %c62 = arith.constant 62 : index
    %167 = memref.load %arg2[%c62] : memref<98xf32, #tpu.memory_space<smem>>
    %168 = vector.broadcast %167 : f32 to vector<16x128xf32>
    %169 = arith.mulf %168, %142 : vector<16x128xf32>
    %170 = arith.addf %134, %169 : vector<16x128xf32>
    %c1_i32_27 = arith.constant 1 : i32
    %171 = tpu.dynamic_rotate %33 by %c1_i32_27 dim 0 : vector<16x128xf32>, i32 -> vector<16x128xf32>
    %c1_i32_28 = arith.constant 1 : i32
    %172 = vector.broadcast %c1_i32_28 : i32 to vector<16x128xi32>
    %173 = arith.cmpi sge, %0, %172 : vector<16x128xi32>
    %c17_i32 = arith.constant 17 : i32
    %174 = vector.broadcast %c17_i32 : i32 to vector<16x128xi32>
    %175 = arith.cmpi slt, %0, %174 : vector<16x128xi32>
    %176 = arith.andi %173, %175 : vector<16x128xi1>
    %cst_29 = arith.constant 0.000000e+00 : f32
    %177 = vector.broadcast %cst_29 : f32 to vector<16x128xf32>
    %178 = arith.select %176, %171, %177 : vector<16x128xi1>, vector<16x128xf32>
    %c14 = arith.constant 14 : index
    %179 = memref.load %arg2[%c14] : memref<98xf32, #tpu.memory_space<smem>>
    %180 = vector.broadcast %179 : f32 to vector<16x128xf32>
    %181 = arith.mulf %180, %178 : vector<16x128xf32>
    %182 = arith.addf %146, %181 : vector<16x128xf32>
    %c15 = arith.constant 15 : index
    %183 = memref.load %arg2[%c15] : memref<98xf32, #tpu.memory_space<smem>>
    %184 = vector.broadcast %183 : f32 to vector<16x128xf32>
    %185 = arith.mulf %184, %178 : vector<16x128xf32>
    %186 = arith.addf %150, %185 : vector<16x128xf32>
    %c16 = arith.constant 16 : index
    %187 = memref.load %arg2[%c16] : memref<98xf32, #tpu.memory_space<smem>>
    %188 = vector.broadcast %187 : f32 to vector<16x128xf32>
    %189 = arith.mulf %188, %178 : vector<16x128xf32>
    %190 = arith.addf %154, %189 : vector<16x128xf32>
    %c17 = arith.constant 17 : index
    %191 = memref.load %arg2[%c17] : memref<98xf32, #tpu.memory_space<smem>>
    %192 = vector.broadcast %191 : f32 to vector<16x128xf32>
    %193 = arith.mulf %192, %178 : vector<16x128xf32>
    %194 = arith.addf %158, %193 : vector<16x128xf32>
    %c18 = arith.constant 18 : index
    %195 = memref.load %arg2[%c18] : memref<98xf32, #tpu.memory_space<smem>>
    %196 = vector.broadcast %195 : f32 to vector<16x128xf32>
    %197 = arith.mulf %196, %178 : vector<16x128xf32>
    %198 = arith.addf %162, %197 : vector<16x128xf32>
    %c19 = arith.constant 19 : index
    %199 = memref.load %arg2[%c19] : memref<98xf32, #tpu.memory_space<smem>>
    %200 = vector.broadcast %199 : f32 to vector<16x128xf32>
    %201 = arith.mulf %200, %178 : vector<16x128xf32>
    %202 = arith.addf %166, %201 : vector<16x128xf32>
    %c20 = arith.constant 20 : index
    %203 = memref.load %arg2[%c20] : memref<98xf32, #tpu.memory_space<smem>>
    %204 = vector.broadcast %203 : f32 to vector<16x128xf32>
    %205 = arith.mulf %204, %178 : vector<16x128xf32>
    %206 = arith.addf %170, %205 : vector<16x128xf32>
    %c1_i32_30 = arith.constant 1 : i32
    %207 = tpu.dynamic_rotate %31 by %c1_i32_30 dim 0 : vector<16x128xf32>, i32 -> vector<16x128xf32>
    %c1_i32_31 = arith.constant 1 : i32
    %208 = vector.broadcast %c1_i32_31 : i32 to vector<16x128xi32>
    %209 = arith.cmpi sge, %0, %208 : vector<16x128xi32>
    %c17_i32_32 = arith.constant 17 : i32
    %210 = vector.broadcast %c17_i32_32 : i32 to vector<16x128xi32>
    %211 = arith.cmpi slt, %0, %210 : vector<16x128xi32>
    %212 = arith.andi %209, %211 : vector<16x128xi1>
    %cst_33 = arith.constant 0.000000e+00 : f32
    %213 = vector.broadcast %cst_33 : f32 to vector<16x128xf32>
    %214 = arith.select %212, %207, %213 : vector<16x128xi1>, vector<16x128xf32>
    %c63 = arith.constant 63 : index
    %215 = memref.load %arg2[%c63] : memref<98xf32, #tpu.memory_space<smem>>
    %216 = vector.broadcast %215 : f32 to vector<16x128xf32>
    %217 = arith.mulf %216, %214 : vector<16x128xf32>
    %218 = arith.addf %182, %217 : vector<16x128xf32>
    %c64 = arith.constant 64 : index
    %219 = memref.load %arg2[%c64] : memref<98xf32, #tpu.memory_space<smem>>
    %220 = vector.broadcast %219 : f32 to vector<16x128xf32>
    %221 = arith.mulf %220, %214 : vector<16x128xf32>
    %222 = arith.addf %186, %221 : vector<16x128xf32>
    %c65 = arith.constant 65 : index
    %223 = memref.load %arg2[%c65] : memref<98xf32, #tpu.memory_space<smem>>
    %224 = vector.broadcast %223 : f32 to vector<16x128xf32>
    %225 = arith.mulf %224, %214 : vector<16x128xf32>
    %226 = arith.addf %190, %225 : vector<16x128xf32>
    %c66 = arith.constant 66 : index
    %227 = memref.load %arg2[%c66] : memref<98xf32, #tpu.memory_space<smem>>
    %228 = vector.broadcast %227 : f32 to vector<16x128xf32>
    %229 = arith.mulf %228, %214 : vector<16x128xf32>
    %230 = arith.addf %194, %229 : vector<16x128xf32>
    %c67 = arith.constant 67 : index
    %231 = memref.load %arg2[%c67] : memref<98xf32, #tpu.memory_space<smem>>
    %232 = vector.broadcast %231 : f32 to vector<16x128xf32>
    %233 = arith.mulf %232, %214 : vector<16x128xf32>
    %234 = arith.addf %198, %233 : vector<16x128xf32>
    %c68 = arith.constant 68 : index
    %235 = memref.load %arg2[%c68] : memref<98xf32, #tpu.memory_space<smem>>
    %236 = vector.broadcast %235 : f32 to vector<16x128xf32>
    %237 = arith.mulf %236, %214 : vector<16x128xf32>
    %238 = arith.addf %202, %237 : vector<16x128xf32>
    %c69 = arith.constant 69 : index
    %239 = memref.load %arg2[%c69] : memref<98xf32, #tpu.memory_space<smem>>
    %240 = vector.broadcast %239 : f32 to vector<16x128xf32>
    %241 = arith.mulf %240, %214 : vector<16x128xf32>
    %242 = arith.addf %206, %241 : vector<16x128xf32>
    %c21 = arith.constant 21 : index
    %243 = memref.load %arg2[%c21] : memref<98xf32, #tpu.memory_space<smem>>
    %244 = vector.broadcast %243 : f32 to vector<16x128xf32>
    %245 = arith.mulf %244, %33 : vector<16x128xf32>
    %246 = arith.addf %218, %245 : vector<16x128xf32>
    %c22 = arith.constant 22 : index
    %247 = memref.load %arg2[%c22] : memref<98xf32, #tpu.memory_space<smem>>
    %248 = vector.broadcast %247 : f32 to vector<16x128xf32>
    %249 = arith.mulf %248, %33 : vector<16x128xf32>
    %250 = arith.addf %222, %249 : vector<16x128xf32>
    %c23 = arith.constant 23 : index
    %251 = memref.load %arg2[%c23] : memref<98xf32, #tpu.memory_space<smem>>
    %252 = vector.broadcast %251 : f32 to vector<16x128xf32>
    %253 = arith.mulf %252, %33 : vector<16x128xf32>
    %254 = arith.addf %226, %253 : vector<16x128xf32>
    %c24 = arith.constant 24 : index
    %255 = memref.load %arg2[%c24] : memref<98xf32, #tpu.memory_space<smem>>
    %256 = vector.broadcast %255 : f32 to vector<16x128xf32>
    %257 = arith.mulf %256, %33 : vector<16x128xf32>
    %258 = arith.addf %230, %257 : vector<16x128xf32>
    %c25 = arith.constant 25 : index
    %259 = memref.load %arg2[%c25] : memref<98xf32, #tpu.memory_space<smem>>
    %260 = vector.broadcast %259 : f32 to vector<16x128xf32>
    %261 = arith.mulf %260, %33 : vector<16x128xf32>
    %262 = arith.addf %234, %261 : vector<16x128xf32>
    %c26 = arith.constant 26 : index
    %263 = memref.load %arg2[%c26] : memref<98xf32, #tpu.memory_space<smem>>
    %264 = vector.broadcast %263 : f32 to vector<16x128xf32>
    %265 = arith.mulf %264, %33 : vector<16x128xf32>
    %266 = arith.addf %238, %265 : vector<16x128xf32>
    %c27 = arith.constant 27 : index
    %267 = memref.load %arg2[%c27] : memref<98xf32, #tpu.memory_space<smem>>
    %268 = vector.broadcast %267 : f32 to vector<16x128xf32>
    %269 = arith.mulf %268, %33 : vector<16x128xf32>
    %270 = arith.addf %242, %269 : vector<16x128xf32>
    %c70 = arith.constant 70 : index
    %271 = memref.load %arg2[%c70] : memref<98xf32, #tpu.memory_space<smem>>
    %272 = vector.broadcast %271 : f32 to vector<16x128xf32>
    %273 = arith.mulf %272, %31 : vector<16x128xf32>
    %274 = arith.addf %246, %273 : vector<16x128xf32>
    %c71 = arith.constant 71 : index
    %275 = memref.load %arg2[%c71] : memref<98xf32, #tpu.memory_space<smem>>
    %276 = vector.broadcast %275 : f32 to vector<16x128xf32>
    %277 = arith.mulf %276, %31 : vector<16x128xf32>
    %278 = arith.addf %250, %277 : vector<16x128xf32>
    %c72 = arith.constant 72 : index
    %279 = memref.load %arg2[%c72] : memref<98xf32, #tpu.memory_space<smem>>
    %280 = vector.broadcast %279 : f32 to vector<16x128xf32>
    %281 = arith.mulf %280, %31 : vector<16x128xf32>
    %282 = arith.addf %254, %281 : vector<16x128xf32>
    %c73 = arith.constant 73 : index
    %283 = memref.load %arg2[%c73] : memref<98xf32, #tpu.memory_space<smem>>
    %284 = vector.broadcast %283 : f32 to vector<16x128xf32>
    %285 = arith.mulf %284, %31 : vector<16x128xf32>
    %286 = arith.addf %258, %285 : vector<16x128xf32>
    %c74 = arith.constant 74 : index
    %287 = memref.load %arg2[%c74] : memref<98xf32, #tpu.memory_space<smem>>
    %288 = vector.broadcast %287 : f32 to vector<16x128xf32>
    %289 = arith.mulf %288, %31 : vector<16x128xf32>
    %290 = arith.addf %262, %289 : vector<16x128xf32>
    %c75 = arith.constant 75 : index
    %291 = memref.load %arg2[%c75] : memref<98xf32, #tpu.memory_space<smem>>
    %292 = vector.broadcast %291 : f32 to vector<16x128xf32>
    %293 = arith.mulf %292, %31 : vector<16x128xf32>
    %294 = arith.addf %266, %293 : vector<16x128xf32>
    %c76 = arith.constant 76 : index
    %295 = memref.load %arg2[%c76] : memref<98xf32, #tpu.memory_space<smem>>
    %296 = vector.broadcast %295 : f32 to vector<16x128xf32>
    %297 = arith.mulf %296, %31 : vector<16x128xf32>
    %298 = arith.addf %270, %297 : vector<16x128xf32>
    %c15_i32 = arith.constant 15 : i32
    %299 = tpu.dynamic_rotate %33 by %c15_i32 dim 0 : vector<16x128xf32>, i32 -> vector<16x128xf32>
    %c-1_i32 = arith.constant -1 : i32
    %300 = vector.broadcast %c-1_i32 : i32 to vector<16x128xi32>
    %301 = arith.cmpi sge, %0, %300 : vector<16x128xi32>
    %c15_i32_34 = arith.constant 15 : i32
    %302 = vector.broadcast %c15_i32_34 : i32 to vector<16x128xi32>
    %303 = arith.cmpi slt, %0, %302 : vector<16x128xi32>
    %304 = arith.andi %301, %303 : vector<16x128xi1>
    %cst_35 = arith.constant 0.000000e+00 : f32
    %305 = vector.broadcast %cst_35 : f32 to vector<16x128xf32>
    %306 = arith.select %304, %299, %305 : vector<16x128xi1>, vector<16x128xf32>
    %c28 = arith.constant 28 : index
    %307 = memref.load %arg2[%c28] : memref<98xf32, #tpu.memory_space<smem>>
    %308 = vector.broadcast %307 : f32 to vector<16x128xf32>
    %309 = arith.mulf %308, %306 : vector<16x128xf32>
    %310 = arith.addf %274, %309 : vector<16x128xf32>
    %c29 = arith.constant 29 : index
    %311 = memref.load %arg2[%c29] : memref<98xf32, #tpu.memory_space<smem>>
    %312 = vector.broadcast %311 : f32 to vector<16x128xf32>
    %313 = arith.mulf %312, %306 : vector<16x128xf32>
    %314 = arith.addf %278, %313 : vector<16x128xf32>
    %c30 = arith.constant 30 : index
    %315 = memref.load %arg2[%c30] : memref<98xf32, #tpu.memory_space<smem>>
    %316 = vector.broadcast %315 : f32 to vector<16x128xf32>
    %317 = arith.mulf %316, %306 : vector<16x128xf32>
    %318 = arith.addf %282, %317 : vector<16x128xf32>
    %c31 = arith.constant 31 : index
    %319 = memref.load %arg2[%c31] : memref<98xf32, #tpu.memory_space<smem>>
    %320 = vector.broadcast %319 : f32 to vector<16x128xf32>
    %321 = arith.mulf %320, %306 : vector<16x128xf32>
    %322 = arith.addf %286, %321 : vector<16x128xf32>
    %c32 = arith.constant 32 : index
    %323 = memref.load %arg2[%c32] : memref<98xf32, #tpu.memory_space<smem>>
    %324 = vector.broadcast %323 : f32 to vector<16x128xf32>
    %325 = arith.mulf %324, %306 : vector<16x128xf32>
    %326 = arith.addf %290, %325 : vector<16x128xf32>
    %c33 = arith.constant 33 : index
    %327 = memref.load %arg2[%c33] : memref<98xf32, #tpu.memory_space<smem>>
    %328 = vector.broadcast %327 : f32 to vector<16x128xf32>
    %329 = arith.mulf %328, %306 : vector<16x128xf32>
    %330 = arith.addf %294, %329 : vector<16x128xf32>
    %c34 = arith.constant 34 : index
    %331 = memref.load %arg2[%c34] : memref<98xf32, #tpu.memory_space<smem>>
    %332 = vector.broadcast %331 : f32 to vector<16x128xf32>
    %333 = arith.mulf %332, %306 : vector<16x128xf32>
    %334 = arith.addf %298, %333 : vector<16x128xf32>
    %c15_i32_36 = arith.constant 15 : i32
    %335 = tpu.dynamic_rotate %31 by %c15_i32_36 dim 0 : vector<16x128xf32>, i32 -> vector<16x128xf32>
    %c-1_i32_37 = arith.constant -1 : i32
    %336 = vector.broadcast %c-1_i32_37 : i32 to vector<16x128xi32>
    %337 = arith.cmpi sge, %0, %336 : vector<16x128xi32>
    %c15_i32_38 = arith.constant 15 : i32
    %338 = vector.broadcast %c15_i32_38 : i32 to vector<16x128xi32>
    %339 = arith.cmpi slt, %0, %338 : vector<16x128xi32>
    %340 = arith.andi %337, %339 : vector<16x128xi1>
    %cst_39 = arith.constant 0.000000e+00 : f32
    %341 = vector.broadcast %cst_39 : f32 to vector<16x128xf32>
    %342 = arith.select %340, %335, %341 : vector<16x128xi1>, vector<16x128xf32>
    %c77 = arith.constant 77 : index
    %343 = memref.load %arg2[%c77] : memref<98xf32, #tpu.memory_space<smem>>
    %344 = vector.broadcast %343 : f32 to vector<16x128xf32>
    %345 = arith.mulf %344, %342 : vector<16x128xf32>
    %346 = arith.addf %310, %345 : vector<16x128xf32>
    %c78 = arith.constant 78 : index
    %347 = memref.load %arg2[%c78] : memref<98xf32, #tpu.memory_space<smem>>
    %348 = vector.broadcast %347 : f32 to vector<16x128xf32>
    %349 = arith.mulf %348, %342 : vector<16x128xf32>
    %350 = arith.addf %314, %349 : vector<16x128xf32>
    %c79 = arith.constant 79 : index
    %351 = memref.load %arg2[%c79] : memref<98xf32, #tpu.memory_space<smem>>
    %352 = vector.broadcast %351 : f32 to vector<16x128xf32>
    %353 = arith.mulf %352, %342 : vector<16x128xf32>
    %354 = arith.addf %318, %353 : vector<16x128xf32>
    %c80 = arith.constant 80 : index
    %355 = memref.load %arg2[%c80] : memref<98xf32, #tpu.memory_space<smem>>
    %356 = vector.broadcast %355 : f32 to vector<16x128xf32>
    %357 = arith.mulf %356, %342 : vector<16x128xf32>
    %358 = arith.addf %322, %357 : vector<16x128xf32>
    %c81 = arith.constant 81 : index
    %359 = memref.load %arg2[%c81] : memref<98xf32, #tpu.memory_space<smem>>
    %360 = vector.broadcast %359 : f32 to vector<16x128xf32>
    %361 = arith.mulf %360, %342 : vector<16x128xf32>
    %362 = arith.addf %326, %361 : vector<16x128xf32>
    %c82 = arith.constant 82 : index
    %363 = memref.load %arg2[%c82] : memref<98xf32, #tpu.memory_space<smem>>
    %364 = vector.broadcast %363 : f32 to vector<16x128xf32>
    %365 = arith.mulf %364, %342 : vector<16x128xf32>
    %366 = arith.addf %330, %365 : vector<16x128xf32>
    %c83 = arith.constant 83 : index
    %367 = memref.load %arg2[%c83] : memref<98xf32, #tpu.memory_space<smem>>
    %368 = vector.broadcast %367 : f32 to vector<16x128xf32>
    %369 = arith.mulf %368, %342 : vector<16x128xf32>
    %370 = arith.addf %334, %369 : vector<16x128xf32>
    %c14_i32 = arith.constant 14 : i32
    %371 = tpu.dynamic_rotate %33 by %c14_i32 dim 0 : vector<16x128xf32>, i32 -> vector<16x128xf32>
    %c-2_i32 = arith.constant -2 : i32
    %372 = vector.broadcast %c-2_i32 : i32 to vector<16x128xi32>
    %373 = arith.cmpi sge, %0, %372 : vector<16x128xi32>
    %c14_i32_40 = arith.constant 14 : i32
    %374 = vector.broadcast %c14_i32_40 : i32 to vector<16x128xi32>
    %375 = arith.cmpi slt, %0, %374 : vector<16x128xi32>
    %376 = arith.andi %373, %375 : vector<16x128xi1>
    %cst_41 = arith.constant 0.000000e+00 : f32
    %377 = vector.broadcast %cst_41 : f32 to vector<16x128xf32>
    %378 = arith.select %376, %371, %377 : vector<16x128xi1>, vector<16x128xf32>
    %c35 = arith.constant 35 : index
    %379 = memref.load %arg2[%c35] : memref<98xf32, #tpu.memory_space<smem>>
    %380 = vector.broadcast %379 : f32 to vector<16x128xf32>
    %381 = arith.mulf %380, %378 : vector<16x128xf32>
    %382 = arith.addf %346, %381 : vector<16x128xf32>
    %c36 = arith.constant 36 : index
    %383 = memref.load %arg2[%c36] : memref<98xf32, #tpu.memory_space<smem>>
    %384 = vector.broadcast %383 : f32 to vector<16x128xf32>
    %385 = arith.mulf %384, %378 : vector<16x128xf32>
    %386 = arith.addf %350, %385 : vector<16x128xf32>
    %c37 = arith.constant 37 : index
    %387 = memref.load %arg2[%c37] : memref<98xf32, #tpu.memory_space<smem>>
    %388 = vector.broadcast %387 : f32 to vector<16x128xf32>
    %389 = arith.mulf %388, %378 : vector<16x128xf32>
    %390 = arith.addf %354, %389 : vector<16x128xf32>
    %c38 = arith.constant 38 : index
    %391 = memref.load %arg2[%c38] : memref<98xf32, #tpu.memory_space<smem>>
    %392 = vector.broadcast %391 : f32 to vector<16x128xf32>
    %393 = arith.mulf %392, %378 : vector<16x128xf32>
    %394 = arith.addf %358, %393 : vector<16x128xf32>
    %c39 = arith.constant 39 : index
    %395 = memref.load %arg2[%c39] : memref<98xf32, #tpu.memory_space<smem>>
    %396 = vector.broadcast %395 : f32 to vector<16x128xf32>
    %397 = arith.mulf %396, %378 : vector<16x128xf32>
    %398 = arith.addf %362, %397 : vector<16x128xf32>
    %c40 = arith.constant 40 : index
    %399 = memref.load %arg2[%c40] : memref<98xf32, #tpu.memory_space<smem>>
    %400 = vector.broadcast %399 : f32 to vector<16x128xf32>
    %401 = arith.mulf %400, %378 : vector<16x128xf32>
    %402 = arith.addf %366, %401 : vector<16x128xf32>
    %c41 = arith.constant 41 : index
    %403 = memref.load %arg2[%c41] : memref<98xf32, #tpu.memory_space<smem>>
    %404 = vector.broadcast %403 : f32 to vector<16x128xf32>
    %405 = arith.mulf %404, %378 : vector<16x128xf32>
    %406 = arith.addf %370, %405 : vector<16x128xf32>
    %c14_i32_42 = arith.constant 14 : i32
    %407 = tpu.dynamic_rotate %31 by %c14_i32_42 dim 0 : vector<16x128xf32>, i32 -> vector<16x128xf32>
    %c-2_i32_43 = arith.constant -2 : i32
    %408 = vector.broadcast %c-2_i32_43 : i32 to vector<16x128xi32>
    %409 = arith.cmpi sge, %0, %408 : vector<16x128xi32>
    %c14_i32_44 = arith.constant 14 : i32
    %410 = vector.broadcast %c14_i32_44 : i32 to vector<16x128xi32>
    %411 = arith.cmpi slt, %0, %410 : vector<16x128xi32>
    %412 = arith.andi %409, %411 : vector<16x128xi1>
    %cst_45 = arith.constant 0.000000e+00 : f32
    %413 = vector.broadcast %cst_45 : f32 to vector<16x128xf32>
    %414 = arith.select %412, %407, %413 : vector<16x128xi1>, vector<16x128xf32>
    %c84 = arith.constant 84 : index
    %415 = memref.load %arg2[%c84] : memref<98xf32, #tpu.memory_space<smem>>
    %416 = vector.broadcast %415 : f32 to vector<16x128xf32>
    %417 = arith.mulf %416, %414 : vector<16x128xf32>
    %418 = arith.addf %382, %417 : vector<16x128xf32>
    %c85 = arith.constant 85 : index
    %419 = memref.load %arg2[%c85] : memref<98xf32, #tpu.memory_space<smem>>
    %420 = vector.broadcast %419 : f32 to vector<16x128xf32>
    %421 = arith.mulf %420, %414 : vector<16x128xf32>
    %422 = arith.addf %386, %421 : vector<16x128xf32>
    %c86 = arith.constant 86 : index
    %423 = memref.load %arg2[%c86] : memref<98xf32, #tpu.memory_space<smem>>
    %424 = vector.broadcast %423 : f32 to vector<16x128xf32>
    %425 = arith.mulf %424, %414 : vector<16x128xf32>
    %426 = arith.addf %390, %425 : vector<16x128xf32>
    %c87 = arith.constant 87 : index
    %427 = memref.load %arg2[%c87] : memref<98xf32, #tpu.memory_space<smem>>
    %428 = vector.broadcast %427 : f32 to vector<16x128xf32>
    %429 = arith.mulf %428, %414 : vector<16x128xf32>
    %430 = arith.addf %394, %429 : vector<16x128xf32>
    %c88 = arith.constant 88 : index
    %431 = memref.load %arg2[%c88] : memref<98xf32, #tpu.memory_space<smem>>
    %432 = vector.broadcast %431 : f32 to vector<16x128xf32>
    %433 = arith.mulf %432, %414 : vector<16x128xf32>
    %434 = arith.addf %398, %433 : vector<16x128xf32>
    %c89 = arith.constant 89 : index
    %435 = memref.load %arg2[%c89] : memref<98xf32, #tpu.memory_space<smem>>
    %436 = vector.broadcast %435 : f32 to vector<16x128xf32>
    %437 = arith.mulf %436, %414 : vector<16x128xf32>
    %438 = arith.addf %402, %437 : vector<16x128xf32>
    %c90 = arith.constant 90 : index
    %439 = memref.load %arg2[%c90] : memref<98xf32, #tpu.memory_space<smem>>
    %440 = vector.broadcast %439 : f32 to vector<16x128xf32>
    %441 = arith.mulf %440, %414 : vector<16x128xf32>
    %442 = arith.addf %406, %441 : vector<16x128xf32>
    %c13_i32 = arith.constant 13 : i32
    %443 = tpu.dynamic_rotate %33 by %c13_i32 dim 0 : vector<16x128xf32>, i32 -> vector<16x128xf32>
    %c-3_i32 = arith.constant -3 : i32
    %444 = vector.broadcast %c-3_i32 : i32 to vector<16x128xi32>
    %445 = arith.cmpi sge, %0, %444 : vector<16x128xi32>
    %c13_i32_46 = arith.constant 13 : i32
    %446 = vector.broadcast %c13_i32_46 : i32 to vector<16x128xi32>
    %447 = arith.cmpi slt, %0, %446 : vector<16x128xi32>
    %448 = arith.andi %445, %447 : vector<16x128xi1>
    %cst_47 = arith.constant 0.000000e+00 : f32
    %449 = vector.broadcast %cst_47 : f32 to vector<16x128xf32>
    %450 = arith.select %448, %443, %449 : vector<16x128xi1>, vector<16x128xf32>
    %c42 = arith.constant 42 : index
    %451 = memref.load %arg2[%c42] : memref<98xf32, #tpu.memory_space<smem>>
    %452 = vector.broadcast %451 : f32 to vector<16x128xf32>
    %453 = arith.mulf %452, %450 : vector<16x128xf32>
    %454 = arith.addf %418, %453 : vector<16x128xf32>
    %c43 = arith.constant 43 : index
    %455 = memref.load %arg2[%c43] : memref<98xf32, #tpu.memory_space<smem>>
    %456 = vector.broadcast %455 : f32 to vector<16x128xf32>
    %457 = arith.mulf %456, %450 : vector<16x128xf32>
    %458 = arith.addf %422, %457 : vector<16x128xf32>
    %c44 = arith.constant 44 : index
    %459 = memref.load %arg2[%c44] : memref<98xf32, #tpu.memory_space<smem>>
    %460 = vector.broadcast %459 : f32 to vector<16x128xf32>
    %461 = arith.mulf %460, %450 : vector<16x128xf32>
    %462 = arith.addf %426, %461 : vector<16x128xf32>
    %c45 = arith.constant 45 : index
    %463 = memref.load %arg2[%c45] : memref<98xf32, #tpu.memory_space<smem>>
    %464 = vector.broadcast %463 : f32 to vector<16x128xf32>
    %465 = arith.mulf %464, %450 : vector<16x128xf32>
    %466 = arith.addf %430, %465 : vector<16x128xf32>
    %c46 = arith.constant 46 : index
    %467 = memref.load %arg2[%c46] : memref<98xf32, #tpu.memory_space<smem>>
    %468 = vector.broadcast %467 : f32 to vector<16x128xf32>
    %469 = arith.mulf %468, %450 : vector<16x128xf32>
    %470 = arith.addf %434, %469 : vector<16x128xf32>
    %c47 = arith.constant 47 : index
    %471 = memref.load %arg2[%c47] : memref<98xf32, #tpu.memory_space<smem>>
    %472 = vector.broadcast %471 : f32 to vector<16x128xf32>
    %473 = arith.mulf %472, %450 : vector<16x128xf32>
    %474 = arith.addf %438, %473 : vector<16x128xf32>
    %c48 = arith.constant 48 : index
    %475 = memref.load %arg2[%c48] : memref<98xf32, #tpu.memory_space<smem>>
    %476 = vector.broadcast %475 : f32 to vector<16x128xf32>
    %477 = arith.mulf %476, %450 : vector<16x128xf32>
    %478 = arith.addf %442, %477 : vector<16x128xf32>
    %c13_i32_48 = arith.constant 13 : i32
    %479 = tpu.dynamic_rotate %31 by %c13_i32_48 dim 0 : vector<16x128xf32>, i32 -> vector<16x128xf32>
    %c-3_i32_49 = arith.constant -3 : i32
    %480 = vector.broadcast %c-3_i32_49 : i32 to vector<16x128xi32>
    %481 = arith.cmpi sge, %0, %480 : vector<16x128xi32>
    %c13_i32_50 = arith.constant 13 : i32
    %482 = vector.broadcast %c13_i32_50 : i32 to vector<16x128xi32>
    %483 = arith.cmpi slt, %0, %482 : vector<16x128xi32>
    %484 = arith.andi %481, %483 : vector<16x128xi1>
    %cst_51 = arith.constant 0.000000e+00 : f32
    %485 = vector.broadcast %cst_51 : f32 to vector<16x128xf32>
    %486 = arith.select %484, %479, %485 : vector<16x128xi1>, vector<16x128xf32>
    %c91 = arith.constant 91 : index
    %487 = memref.load %arg2[%c91] : memref<98xf32, #tpu.memory_space<smem>>
    %488 = vector.broadcast %487 : f32 to vector<16x128xf32>
    %489 = arith.mulf %488, %486 : vector<16x128xf32>
    %490 = arith.addf %454, %489 : vector<16x128xf32>
    %c92 = arith.constant 92 : index
    %491 = memref.load %arg2[%c92] : memref<98xf32, #tpu.memory_space<smem>>
    %492 = vector.broadcast %491 : f32 to vector<16x128xf32>
    %493 = arith.mulf %492, %486 : vector<16x128xf32>
    %494 = arith.addf %458, %493 : vector<16x128xf32>
    %c93 = arith.constant 93 : index
    %495 = memref.load %arg2[%c93] : memref<98xf32, #tpu.memory_space<smem>>
    %496 = vector.broadcast %495 : f32 to vector<16x128xf32>
    %497 = arith.mulf %496, %486 : vector<16x128xf32>
    %498 = arith.addf %462, %497 : vector<16x128xf32>
    %c94 = arith.constant 94 : index
    %499 = memref.load %arg2[%c94] : memref<98xf32, #tpu.memory_space<smem>>
    %500 = vector.broadcast %499 : f32 to vector<16x128xf32>
    %501 = arith.mulf %500, %486 : vector<16x128xf32>
    %502 = arith.addf %466, %501 : vector<16x128xf32>
    %c95 = arith.constant 95 : index
    %503 = memref.load %arg2[%c95] : memref<98xf32, #tpu.memory_space<smem>>
    %504 = vector.broadcast %503 : f32 to vector<16x128xf32>
    %505 = arith.mulf %504, %486 : vector<16x128xf32>
    %506 = arith.addf %470, %505 : vector<16x128xf32>
    %c96 = arith.constant 96 : index
    %507 = memref.load %arg2[%c96] : memref<98xf32, #tpu.memory_space<smem>>
    %508 = vector.broadcast %507 : f32 to vector<16x128xf32>
    %509 = arith.mulf %508, %486 : vector<16x128xf32>
    %510 = arith.addf %474, %509 : vector<16x128xf32>
    %c97 = arith.constant 97 : index
    %511 = memref.load %arg2[%c97] : memref<98xf32, #tpu.memory_space<smem>>
    %512 = vector.broadcast %511 : f32 to vector<16x128xf32>
    %513 = arith.mulf %512, %486 : vector<16x128xf32>
    %514 = arith.addf %478, %513 : vector<16x128xf32>
    %c0_52 = arith.constant 0 : index
    %515 = memref.load %arg3[%c0_52] : memref<1xf32, #tpu.memory_space<smem>>
    %516 = vector.broadcast %515 : f32 to vector<16x128xf32>
    %517 = arith.addf %502, %516 : vector<16x128xf32>
    %c3_i32_53 = arith.constant 3 : i32
    %518 = tpu.dynamic_rotate %490 by %c3_i32_53 dim 1 : vector<16x128xf32>, i32 -> vector<16x128xf32>
    %c3_i32_54 = arith.constant 3 : i32
    %519 = vector.broadcast %c3_i32_54 : i32 to vector<16x128xi32>
    %520 = arith.cmpi sge, %17, %519 : vector<16x128xi32>
    %c19_i32_55 = arith.constant 19 : i32
    %521 = vector.broadcast %c19_i32_55 : i32 to vector<16x128xi32>
    %522 = arith.cmpi slt, %17, %521 : vector<16x128xi32>
    %523 = arith.andi %520, %522 : vector<16x128xi1>
    %cst_56 = arith.constant 0.000000e+00 : f32
    %524 = vector.broadcast %cst_56 : f32 to vector<16x128xf32>
    %525 = arith.select %523, %518, %524 : vector<16x128xi1>, vector<16x128xf32>
    %526 = arith.addf %517, %525 : vector<16x128xf32>
    %c2_i32_57 = arith.constant 2 : i32
    %527 = tpu.dynamic_rotate %494 by %c2_i32_57 dim 1 : vector<16x128xf32>, i32 -> vector<16x128xf32>
    %c2_i32_58 = arith.constant 2 : i32
    %528 = vector.broadcast %c2_i32_58 : i32 to vector<16x128xi32>
    %529 = arith.cmpi sge, %17, %528 : vector<16x128xi32>
    %c18_i32_59 = arith.constant 18 : i32
    %530 = vector.broadcast %c18_i32_59 : i32 to vector<16x128xi32>
    %531 = arith.cmpi slt, %17, %530 : vector<16x128xi32>
    %532 = arith.andi %529, %531 : vector<16x128xi1>
    %cst_60 = arith.constant 0.000000e+00 : f32
    %533 = vector.broadcast %cst_60 : f32 to vector<16x128xf32>
    %534 = arith.select %532, %527, %533 : vector<16x128xi1>, vector<16x128xf32>
    %535 = arith.addf %526, %534 : vector<16x128xf32>
    %c1_i32_61 = arith.constant 1 : i32
    %536 = tpu.dynamic_rotate %498 by %c1_i32_61 dim 1 : vector<16x128xf32>, i32 -> vector<16x128xf32>
    %c1_i32_62 = arith.constant 1 : i32
    %537 = vector.broadcast %c1_i32_62 : i32 to vector<16x128xi32>
    %538 = arith.cmpi sge, %17, %537 : vector<16x128xi32>
    %c17_i32_63 = arith.constant 17 : i32
    %539 = vector.broadcast %c17_i32_63 : i32 to vector<16x128xi32>
    %540 = arith.cmpi slt, %17, %539 : vector<16x128xi32>
    %541 = arith.andi %538, %540 : vector<16x128xi1>
    %cst_64 = arith.constant 0.000000e+00 : f32
    %542 = vector.broadcast %cst_64 : f32 to vector<16x128xf32>
    %543 = arith.select %541, %536, %542 : vector<16x128xi1>, vector<16x128xf32>
    %544 = arith.addf %535, %543 : vector<16x128xf32>
    %c127_i32 = arith.constant 127 : i32
    %545 = tpu.dynamic_rotate %506 by %c127_i32 dim 1 : vector<16x128xf32>, i32 -> vector<16x128xf32>
    %c-1_i32_65 = arith.constant -1 : i32
    %546 = vector.broadcast %c-1_i32_65 : i32 to vector<16x128xi32>
    %547 = arith.cmpi sge, %17, %546 : vector<16x128xi32>
    %c15_i32_66 = arith.constant 15 : i32
    %548 = vector.broadcast %c15_i32_66 : i32 to vector<16x128xi32>
    %549 = arith.cmpi slt, %17, %548 : vector<16x128xi32>
    %550 = arith.andi %547, %549 : vector<16x128xi1>
    %cst_67 = arith.constant 0.000000e+00 : f32
    %551 = vector.broadcast %cst_67 : f32 to vector<16x128xf32>
    %552 = arith.select %550, %545, %551 : vector<16x128xi1>, vector<16x128xf32>
    %553 = arith.addf %544, %552 : vector<16x128xf32>
    %c126_i32 = arith.constant 126 : i32
    %554 = tpu.dynamic_rotate %510 by %c126_i32 dim 1 : vector<16x128xf32>, i32 -> vector<16x128xf32>
    %c-2_i32_68 = arith.constant -2 : i32
    %555 = vector.broadcast %c-2_i32_68 : i32 to vector<16x128xi32>
    %556 = arith.cmpi sge, %17, %555 : vector<16x128xi32>
    %c14_i32_69 = arith.constant 14 : i32
    %557 = vector.broadcast %c14_i32_69 : i32 to vector<16x128xi32>
    %558 = arith.cmpi slt, %17, %557 : vector<16x128xi32>
    %559 = arith.andi %556, %558 : vector<16x128xi1>
    %cst_70 = arith.constant 0.000000e+00 : f32
    %560 = vector.broadcast %cst_70 : f32 to vector<16x128xf32>
    %561 = arith.select %559, %554, %560 : vector<16x128xi1>, vector<16x128xf32>
    %562 = arith.addf %553, %561 : vector<16x128xf32>
    %c125_i32 = arith.constant 125 : i32
    %563 = tpu.dynamic_rotate %514 by %c125_i32 dim 1 : vector<16x128xf32>, i32 -> vector<16x128xf32>
    %c-3_i32_71 = arith.constant -3 : i32
    %564 = vector.broadcast %c-3_i32_71 : i32 to vector<16x128xi32>
    %565 = arith.cmpi sge, %17, %564 : vector<16x128xi32>
    %c13_i32_72 = arith.constant 13 : i32
    %566 = vector.broadcast %c13_i32_72 : i32 to vector<16x128xi32>
    %567 = arith.cmpi slt, %17, %566 : vector<16x128xi32>
    %568 = arith.andi %565, %567 : vector<16x128xi1>
    %cst_73 = arith.constant 0.000000e+00 : f32
    %569 = vector.broadcast %cst_73 : f32 to vector<16x128xf32>
    %570 = arith.select %568, %563, %569 : vector<16x128xi1>, vector<16x128xf32>
    %571 = arith.addf %562, %570 : vector<16x128xf32>
    %572 = arith.negf %571 : vector<16x128xf32>
    %573 = math.exp %572 : vector<16x128xf32>
    %cst_74 = arith.constant 1.000000e+00 : f32
    %574 = vector.broadcast %cst_74 : f32 to vector<16x128xf32>
    %575 = arith.addf %574, %573 : vector<16x128xf32>
    %576 = arith.divf %574, %575 : vector<16x128xf32>
    %c0_75 = arith.constant 0 : index
    %c0_76 = arith.constant 0 : index
    %577 = vector.load %arg5[%c0_75, %c0_76] : memref<16x128xf32, #tpu.memory_space<vmem>>, vector<16x128xf32>
    tpu.vector_store %arg5[%c0_75, %c0_76], %576 {strides = array<i32>} : memref<16x128xf32, #tpu.memory_space<vmem>>, vector<16x128xf32>,
    return
  }
  func.func @transform_0(%arg0: i32, %arg1: i32) -> i32 {
    %c0_i32 = arith.constant 0 : i32
    %c0_i32_0 = arith.constant 0 : i32
    return %c0_i32 : i32
  }
  func.func @transform_1(%arg0: i32, %arg1: i32) -> i32 {
    %c0_i32 = arith.constant 0 : i32
    %c0_i32_0 = arith.constant 0 : i32
    return %c0_i32 : i32
  }
  func.func @transform_2(%arg0: i32, %arg1: i32) -> (i32, i32, i32) {
    %c0_i32 = arith.constant 0 : i32
    %c0_i32_0 = arith.constant 0 : i32
    return %arg1, %c0_i32, %arg0 : i32, i32, i32
  }
  func.func @transform_3(%arg0: i32, %arg1: i32) -> (i32, i32) {
    %c0_i32 = arith.constant 0 : i32
    %c0_i32_0 = arith.constant 0 : i32
    return %c0_i32, %arg0 : i32, i32
  }
}

</mosaic_0001>

<llo_original>
// kernel: tpu_custom_call.1
$region0: #{tpu_custom_call.1}
  #allocation0 [shape = 'u32[]', space=smem, size = 0x4, offset = 0x4, fixed_abs, tag = 'smem constant byte address 0x4 - core index']
  #allocation1 [shape = 'u32[144,128]{1,0:T(1,128)}', space=vmem, size = 0x12000, scoped, tag = 'internal scratch']
  #allocation2 [shape = 'f32[1]{0:T(128)S(6)}', space=smem, size = 0x200, scoped, tag = 'scoped memory for tpu_custom_call.1']
  %s0 = inlined_call_operand.vmem [shape: f32[98], index: 0, kind: input, shape index: {}]
  %s1 = inlined_call_operand.<no memory space> [shape: f32[1], index: 1, kind: input, shape index: {}]
  %s2 = inlined_call_operand.hbm [shape: f32[4,16,128], index: 2, kind: input, shape index: {}]
  %s3 = inlined_call_operand.hbm [shape: f32[16,128], index: 3, kind: output, shape index: {}]
  %s4 = sld [smem:[#allocation0]]
  $region30: #{tpu_custom_call.1} parent=0
    _
  %s6 = ssub.s32 1, %s4
  %s7 = scalar_select 0, %s6, %s4
  %8 = sst [smem:[#allocation2]] %s1
  $region1: #{tpu_custom_call.1} parent=0
    #allocation3 [shape = 'u8[512]{0}', space=smem, size = 0x200, scoped, tag = 'input window, operand 0, single buffered']
    #allocation4 [shape = 's32[1]{0}', space=sflag, size = 0x4, scoped, tag = 'scoped memory for tpu_custom_call.1']
    #allocation5 [shape = 's32[1]{0}', space=sflag, size = 0x4, scoped, tag = 'scoped memory for tpu_custom_call.1']
    #allocation6 [shape = 's32[1]{0}', space=sflag, size = 0x4, scoped, tag = 'scoped memory for tpu_custom_call.1']
    #allocation7 [shape = 'u8[32768]{0}', space=vmem, size = 0x8000, scoped, tag = 'input window, operand 2, single buffered']
    #allocation8 [shape = 'u8[8192]{0}', space=vmem, size = 0x2000, scoped, tag = 'output window, operand 0, single buffered']
    %9 = vsyncpa [#allocation6], 0
    %10 = vsyncpa [#allocation4], 0
    %11 = vsyncpa [#allocation5], 0
    // Predicated region
    $region2: #{tpu_custom_call.1} parent=1 // pred_check
      _
    $region3: #{tpu_custom_call.1} parent=1 // pred_check_branch
      %13 = sbr.rel (0) target = $region5
    $region4: #{tpu_custom_call.1} parent=1 // pred_region
      %s15 = ssub.s32 16, 16
      %16 = vsyncadd [#allocation6], %s15
      %s18 = sshll.u32 %s0, 4
      %s19 = int_to_ptr.vmem [resolvable:$true] %s18
      %21 = dma.vmem_to_smem %s19, 16, [#allocation3], [#allocation6]
    $region5: #{tpu_custom_call.1} parent=1 // pred_fallthru
      _
    // Predicated region
    $region6: #{tpu_custom_call.1} parent=1 // pred_check
      _
    $region7: #{tpu_custom_call.1} parent=1 // pred_check_branch
      %23 = sbr.rel (0) target = $region9
    $region8: #{tpu_custom_call.1} parent=1 // pred_region
      _
    $region9: #{tpu_custom_call.1} parent=1 // pred_fallthru
      _
    // Predicated region
    $region10: #{tpu_custom_call.1} parent=1 // pred_check
      _
    $region11: #{tpu_custom_call.1} parent=1 // pred_check_branch
      %25 = sbr.rel (0) target = $region13
    $region12: #{tpu_custom_call.1} parent=1 // pred_region
      %s27 = ssub.s32 1024, 1024
      %28 = vsyncadd [#allocation4], %s27
      %s29 = sshll.u32 [#allocation7], 4
      %s30 = int_to_ptr.vmem [resolvable:$true] %s29
      %35 = dma.hbm_to_vmem [thread:$0]  %s2, 1024, %s30, [#allocation4], 128, 128, 8
    $region13: #{tpu_custom_call.1} parent=1 // pred_fallthru
      _
    // Predicated region
    $region14: #{tpu_custom_call.1} parent=1 // pred_check
      _
    $region15: #{tpu_custom_call.1} parent=1 // pred_check_branch
      %37 = sbr.rel (0) target = $region17
    $region16: #{tpu_custom_call.1} parent=1 // pred_region
      %38 = dma.done [#allocation6], 16
    $region17: #{tpu_custom_call.1} parent=1 // pred_fallthru
      _
    // Predicated region
    $region18: #{tpu_custom_call.1} parent=1 // pred_check
      _
    $region19: #{tpu_custom_call.1} parent=1 // pred_check_branch
      %40 = sbr.rel (0) target = $region21
    $region20: #{tpu_custom_call.1} parent=1 // pred_region
      %41 = dma.done [#allocation4], 1024
    $region21: #{tpu_custom_call.1} parent=1 // pred_fallthru
      _
    %42 = sfence
    %v43 = vlaneseq
    %v44 = vshrl.u32 %v43, 7
    %v45 = vadd.s32 %v44, 8
    %v46 = vlaneseq
    %v47 = vand.u32 %v46, 127
    %vm48 = vcmp.lt.s32.totalorder %v47, 0
    %v49 = vsub.s32 0, %v47
    %v50 = vsel %vm48, %v49, %v47
    %v51 = vshrl.u32 %v50, 4
    %v52 = vand.u32 %v50, 15
    %v53 = vsub.s32 0, %v52
    %v54 = vsel %vm48, %v53, %v52
    %vm55 = vcmp.ne.s32.totalorder %v54, 0
    %vm56 = vcmp.lt.s32.totalorder %v54, 0
    %vm57 = vmand %vm56, %vm55
    %v58 = vadd.s32 %v54, 16
    %v59 = vsel %vm57, %v58, %v54
    %v60 = vld [vmem:[#allocation7] sm:$0xff]
    %v61 = vld [vmem:[#allocation7 + $0x8] sm:$0xff]
    %s62 = scalar_lea.vmem [#allocation7], 16
    %v63 = vld [vmem:[%s62] sm:$0xff]
    %v64 = vld [vmem:[%s62 + $0x8] sm:$0xff]
    %v65 = vadd.f32 %v60, %v63
    %v66 = vadd.f32 %v61, %v64
    %v67 = vmax.f32 %v60, %v63
    %v68 = vmax.f32 %v61, %v64
    %s69 = scalar_lea.vmem [#allocation7], 32
    %v70 = vld [vmem:[%s69] sm:$0xff]
    %v71 = vld [vmem:[%s69 + $0x8] sm:$0xff]
    %v72 = vadd.f32 %v65, %v70
    %v73 = vadd.f32 %v66, %v71
    %v74 = vmax.f32 %v67, %v70
    %v75 = vmax.f32 %v68, %v71
    %s76 = scalar_lea.vmem [#allocation7], 48
    %v77 = vld [vmem:[%s76] sm:$0xff]
    %v78 = vld [vmem:[%s76 + $0x8] sm:$0xff]
    %v79 = vadd.f32 %v72, %v77
    %v80 = vadd.f32 %v73, %v78
    %v81 = vmax.f32 %v74, %v77
    %v82 = vmax.f32 %v75, %v78
    %v83 = vmul.f32 %v79, 0.25
    %v84 = vmul.f32 %v80, 0.25
    %v85 = vrot.slane %v83, 5
    %v86 = vrot.slane %v84, 5
    %vm87 = vcmp.lt.s32.totalorder %v44, 3
    %v88 = vsel %vm87, %v85, %v86
    %v89 = vsel %vm87, %v86, %v85
    %vm90 = vcmp.ge.s32.totalorder %v44, 3
    %vm91 = vcmp.ge.s32.totalorder %v45, 3
    %vm92 = vcmp.lt.s32.totalorder %v44, 19
    %vm93 = vcmp.lt.s32.totalorder %v45, 19
    %vm94 = vmand %vm90, %vm92
    %vm95 = vmand %vm91, %vm93
    %v96 = vsel %vm94, %v89, 0.0
    %v97 = vsel %vm95, %v88, 0.0
    %s98 = sld [smem:[#allocation3]]
    %v99 = vstv %s98
    %v100 = vmul.f32 %v99, %v96
    %v101 = vmul.f32 %v99, %v97
    %s102 = sld [smem:[#allocation3 + $0x1]]
    %v103 = vstv %s102
    %v104 = vmul.f32 %v103, %v96
    %v105 = vmul.f32 %v103, %v97
    %s106 = sld [smem:[#allocation3 + $0x2]]
    %v107 = vstv %s106
    %v108 = vmul.f32 %v107, %v96
    %v109 = vmul.f32 %v107, %v97
    %s110 = sld [smem:[#allocation3 + $0x3]]
    %v111 = vstv %s110
    %v112 = vmul.f32 %v111, %v96
    %v113 = vmul.f32 %v111, %v97
    %s114 = sld [smem:[#allocation3 + $0x4]]
    %v115 = vstv %s114
    %v116 = vmul.f32 %v115, %v96
    %v117 = vmul.f32 %v115, %v97
    %s118 = sld [smem:[#allocation3 + $0x5]]
    %v119 = vstv %s118
    %v120 = vmul.f32 %v119, %v96
    %v121 = vmul.f32 %v119, %v97
    %s122 = sld [smem:[#allocation3 + $0x6]]
    %v123 = vstv %s122
    %v124 = vmul.f32 %v123, %v96
    %v125 = vmul.f32 %v123, %v97
    %v126 = vrot.slane %v81, 5
    %v127 = vrot.slane %v82, 5
    %v128 = vsel %vm87, %v126, %v127
    %v129 = vsel %vm87, %v127, %v126
    %v130 = vsel %vm94, %v129, 0.0
    %v131 = vsel %vm95, %v128, 0.0
    %s132 = sld [smem:[#allocation3 + $0x31]]
    %v133 = vstv %s132
    %v134 = vmul.f32 %v133, %v130
    %v135 = vmul.f32 %v133, %v131
    %v136 = vadd.f32 %v100, %v134
    %v137 = vadd.f32 %v101, %v135
    %s138 = sld [smem:[#allocation3 + $0x32]]
    %v139 = vstv %s138
    %v140 = vmul.f32 %v139, %v130
    %v141 = vmul.f32 %v139, %v131
    %v142 = vadd.f32 %v104, %v140
    %v143 = vadd.f32 %v105, %v141
    %s144 = sld [smem:[#allocation3 + $0x33]]
    %v145 = vstv %s144
    %v146 = vmul.f32 %v145, %v130
    %v147 = vmul.f32 %v145, %v131
    %v148 = vadd.f32 %v108, %v146
    %v149 = vadd.f32 %v109, %v147
    %s150 = sld [smem:[#allocation3 + $0x34]]
    %v151 = vstv %s150
    %v152 = vmul.f32 %v151, %v130
    %v153 = vmul.f32 %v151, %v131
    %v154 = vadd.f32 %v112, %v152
    %v155 = vadd.f32 %v113, %v153
    %s156 = sld [smem:[#allocation3 + $0x35]]
    %v157 = vstv %s156
    %v158 = vmul.f32 %v157, %v130
    %v159 = vmul.f32 %v157, %v131
    %v160 = vadd.f32 %v116, %v158
    %v161 = vadd.f32 %v117, %v159
    %s162 = sld [smem:[#allocation3 + $0x36]]
    %v163 = vstv %s162
    %v164 = vmul.f32 %v163, %v130
    %v165 = vmul.f32 %v163, %v131
    %v166 = vadd.f32 %v120, %v164
    %v167 = vadd.f32 %v121, %v165
    %s168 = sld [smem:[#allocation3 + $0x37]]
    %v169 = vstv %s168
    %v170 = vmul.f32 %v169, %v130
    %v171 = vmul.f32 %v169, %v131
    %v172 = vadd.f32 %v124, %v170
    %v173 = vadd.f32 %v125, %v171
    %v174 = vrot.slane %v83, 6
    %v175 = vrot.slane %v84, 6
    %vm176 = vcmp.lt.s32.totalorder %v44, 2
    %v177 = vsel %vm176, %v174, %v175
    %v178 = vsel %vm176, %v175, %v174
    %vm179 = vcmp.ge.s32.totalorder %v44, 2
    %vm180 = vcmp.ge.s32.totalorder %v45, 2
    %vm181 = vcmp.lt.s32.totalorder %v44, 18
    %vm182 = vcmp.lt.s32.totalorder %v45, 18
    %vm183 = vmand %vm179, %vm181
    %vm184 = vmand %vm180, %vm182
    %v185 = vsel %vm183, %v178, 0.0
    %v186 = vsel %vm184, %v177, 0.0
    %s187 = sld [smem:[#allocation3 + $0x7]]
    %v188 = vstv %s187
    %v189 = vmul.f32 %v188, %v185
    %v190 = vmul.f32 %v188, %v186
    %v191 = vadd.f32 %v136, %v189
    %v192 = vadd.f32 %v137, %v190
    %s193 = sld [smem:[#allocation3 + $0x8]]
    %v194 = vstv %s193
    %v195 = vmul.f32 %v194, %v185
    %v196 = vmul.f32 %v194, %v186
    %v197 = vadd.f32 %v142, %v195
    %v198 = vadd.f32 %v143, %v196
    %s199 = sld [smem:[#allocation3 + $0x9]]
    %v200 = vstv %s199
    %v201 = vmul.f32 %v200, %v185
    %v202 = vmul.f32 %v200, %v186
    %v203 = vadd.f32 %v148, %v201
    %v204 = vadd.f32 %v149, %v202
    %s205 = sld [smem:[#allocation3 + $0xa]]
    %v206 = vstv %s205
    %v207 = vmul.f32 %v206, %v185
    %v208 = vmul.f32 %v206, %v186
    %v209 = vadd.f32 %v154, %v207
    %v210 = vadd.f32 %v155, %v208
    %s211 = sld [smem:[#allocation3 + $0xb]]
    %v212 = vstv %s211
    %v213 = vmul.f32 %v212, %v185
    %v214 = vmul.f32 %v212, %v186
    %v215 = vadd.f32 %v160, %v213
    %v216 = vadd.f32 %v161, %v214
    %s217 = sld [smem:[#allocation3 + $0xc]]
    %v218 = vstv %s217
    %v219 = vmul.f32 %v218, %v185
    %v220 = vmul.f32 %v218, %v186
    %v221 = vadd.f32 %v166, %v219
    %v222 = vadd.f32 %v167, %v220
    %s223 = sld [smem:[#allocation3 + $0xd]]
    %v224 = vstv %s223
    %v225 = vmul.f32 %v224, %v185
    %v226 = vmul.f32 %v224, %v186
    %v227 = vadd.f32 %v172, %v225
    %v228 = vadd.f32 %v173, %v226
    %v229 = vrot.slane %v81, 6
    %v230 = vrot.slane %v82, 6
    %v231 = vsel %vm176, %v229, %v230
    %v232 = vsel %vm176, %v230, %v229
    %v233 = vsel %vm183, %v232, 0.0
    %v234 = vsel %vm184, %v231, 0.0
    %s235 = sld [smem:[#allocation3 + $0x38]]
    %v236 = vstv %s235
    %v237 = vmul.f32 %v236, %v233
    %v238 = vmul.f32 %v236, %v234
    %v239 = vadd.f32 %v191, %v237
    %v240 = vadd.f32 %v192, %v238
    %s241 = sld [smem:[#allocation3 + $0x39]]
    %v242 = vstv %s241
    %v243 = vmul.f32 %v242, %v233
    %v244 = vmul.f32 %v242, %v234
    %v245 = vadd.f32 %v197, %v243
    %v246 = vadd.f32 %v198, %v244
    %s247 = sld [smem:[#allocation3 + $0x3a]]
    %v248 = vstv %s247
    %v249 = vmul.f32 %v248, %v233
    %v250 = vmul.f32 %v248, %v234
    %v251 = vadd.f32 %v203, %v249
    %v252 = vadd.f32 %v204, %v250
    %s253 = sld [smem:[#allocation3 + $0x3b]]
    %v254 = vstv %s253
    %v255 = vmul.f32 %v254, %v233
    %v256 = vmul.f32 %v254, %v234
    %v257 = vadd.f32 %v209, %v255
    %v258 = vadd.f32 %v210, %v256
    %s259 = sld [smem:[#allocation3 + $0x3c]]
    %v260 = vstv %s259
    %v261 = vmul.f32 %v260, %v233
    %v262 = vmul.f32 %v260, %v234
    %v263 = vadd.f32 %v215, %v261
    %v264 = vadd.f32 %v216, %v262
    %s265 = sld [smem:[#allocation3 + $0x3d]]
    %v266 = vstv %s265
    %v267 = vmul.f32 %v266, %v233
    %v268 = vmul.f32 %v266, %v234
    %v269 = vadd.f32 %v221, %v267
    %v270 = vadd.f32 %v222, %v268
    %s271 = sld [smem:[#allocation3 + $0x3e]]
    %v272 = vstv %s271
    %v273 = vmul.f32 %v272, %v233
    %v274 = vmul.f32 %v272, %v234
    %v275 = vadd.f32 %v227, %v273
    %v276 = vadd.f32 %v228, %v274
    %v277 = vrot.slane %v83, 7
    %v278 = vrot.slane %v84, 7
    %vm279 = vcmp.lt.s32.totalorder %v44, 1
    %v280 = vsel %vm279, %v277, %v278
    %v281 = vsel %vm279, %v278, %v277
    %vm282 = vcmp.ge.s32.totalorder %v44, 1
    %vm283 = vcmp.ge.s32.totalorder %v45, 1
    %vm284 = vcmp.lt.s32.totalorder %v44, 17
    %vm285 = vcmp.lt.s32.totalorder %v45, 17
    %vm286 = vmand %vm282, %vm284
    %vm287 = vmand %vm283, %vm285
    %v288 = vsel %vm286, %v281, 0.0
    %v289 = vsel %vm287, %v280, 0.0
    %s290 = sld [smem:[#allocation3 + $0xe]]
    %v291 = vstv %s290
    %v292 = vmul.f32 %v291, %v288
    %v293 = vmul.f32 %v291, %v289
    %v294 = vadd.f32 %v239, %v292
    %v295 = vadd.f32 %v240, %v293
    %s296 = sld [smem:[#allocation3 + $0xf]]
    %v297 = vstv %s296
    %v298 = vmul.f32 %v297, %v288
    %v299 = vmul.f32 %v297, %v289
    %v300 = vadd.f32 %v245, %v298
    %v301 = vadd.f32 %v246, %v299
    %s302 = sld [smem:[#allocation3 + $0x10]]
    %v303 = vstv %s302
    %v304 = vmul.f32 %v303, %v288
    %v305 = vmul.f32 %v303, %v289
    %v306 = vadd.f32 %v251, %v304
    %v307 = vadd.f32 %v252, %v305
    %s308 = sld [smem:[#allocation3 + $0x11]]
    %v309 = vstv %s308
    %v310 = vmul.f32 %v309, %v288
    %v311 = vmul.f32 %v309, %v289
    %v312 = vadd.f32 %v257, %v310
    %v313 = vadd.f32 %v258, %v311
    %s314 = sld [smem:[#allocation3 + $0x12]]
    %v315 = vstv %s314
    %v316 = vmul.f32 %v315, %v288
    %v317 = vmul.f32 %v315, %v289
    %v318 = vadd.f32 %v263, %v316
    %v319 = vadd.f32 %v264, %v317
    %s320 = sld [smem:[#allocation3 + $0x13]]
    %v321 = vstv %s320
    %v322 = vmul.f32 %v321, %v288
    %v323 = vmul.f32 %v321, %v289
    %v324 = vadd.f32 %v269, %v322
    %v325 = vadd.f32 %v270, %v323
    %s326 = sld [smem:[#allocation3 + $0x14]]
    %v327 = vstv %s326
    %v328 = vmul.f32 %v327, %v288
    %v329 = vmul.f32 %v327, %v289
    %v330 = vadd.f32 %v275, %v328
    %v331 = vadd.f32 %v276, %v329
    %v332 = vrot.slane %v81, 7
    %v333 = vrot.slane %v82, 7
    %v334 = vsel %vm279, %v332, %v333
    %v335 = vsel %vm279, %v333, %v332
    %v336 = vsel %vm286, %v335, 0.0
    %v337 = vsel %vm287, %v334, 0.0
    %s338 = sld [smem:[#allocation3 + $0x3f]]
    %v339 = vstv %s338
    %v340 = vmul.f32 %v339, %v336
    %v341 = vmul.f32 %v339, %v337
    %v342 = vadd.f32 %v294, %v340
    %v343 = vadd.f32 %v295, %v341
    %s344 = sld [smem:[#allocation3 + $0x40]]
    %v345 = vstv %s344
    %v346 = vmul.f32 %v345, %v336
    %v347 = vmul.f32 %v345, %v337
    %v348 = vadd.f32 %v300, %v346
    %v349 = vadd.f32 %v301, %v347
    %s350 = sld [smem:[#allocation3 + $0x41]]
    %v351 = vstv %s350
    %v352 = vmul.f32 %v351, %v336
    %v353 = vmul.f32 %v351, %v337
    %v354 = vadd.f32 %v306, %v352
    %v355 = vadd.f32 %v307, %v353
    %s356 = sld [smem:[#allocation3 + $0x42]]
    %v357 = vstv %s356
    %v358 = vmul.f32 %v357, %v336
    %v359 = vmul.f32 %v357, %v337
    %v360 = vadd.f32 %v312, %v358
    %v361 = vadd.f32 %v313, %v359
    %s362 = sld [smem:[#allocation3 + $0x43]]
    %v363 = vstv %s362
    %v364 = vmul.f32 %v363, %v336
    %v365 = vmul.f32 %v363, %v337
    %v366 = vadd.f32 %v318, %v364
    %v367 = vadd.f32 %v319, %v365
    %s368 = sld [smem:[#allocation3 + $0x44]]
    %v369 = vstv %s368
    %v370 = vmul.f32 %v369, %v336
    %v371 = vmul.f32 %v369, %v337
    %v372 = vadd.f32 %v324, %v370
    %v373 = vadd.f32 %v325, %v371
    %s374 = sld [smem:[#allocation3 + $0x45]]
    %v375 = vstv %s374
    %v376 = vmul.f32 %v375, %v336
    %v377 = vmul.f32 %v375, %v337
    %v378 = vadd.f32 %v330, %v376
    %v379 = vadd.f32 %v331, %v377
    %s380 = sld [smem:[#allocation3 + $0x15]]
    %v381 = vstv %s380
    %v382 = vmul.f32 %v381, %v83
    %v383 = vmul.f32 %v381, %v84
    %v384 = vadd.f32 %v342, %v382
    %v385 = vadd.f32 %v343, %v383
    %s386 = sld [smem:[#allocation3 + $0x16]]
    %v387 = vstv %s386
    %v388 = vmul.f32 %v387, %v83
    %v389 = vmul.f32 %v387, %v84
    %v390 = vadd.f32 %v348, %v388
    %v391 = vadd.f32 %v349, %v389
    %s392 = sld [smem:[#allocation3 + $0x17]]
    %v393 = vstv %s392
    %v394 = vmul.f32 %v393, %v83
    %v395 = vmul.f32 %v393, %v84
    %v396 = vadd.f32 %v354, %v394
    %v397 = vadd.f32 %v355, %v395
    %s398 = sld [smem:[#allocation3 + $0x18]]
    %v399 = vstv %s398
    %v400 = vmul.f32 %v399, %v83
    %v401 = vmul.f32 %v399, %v84
    %v402 = vadd.f32 %v360, %v400
    %v403 = vadd.f32 %v361, %v401
    %s404 = sld [smem:[#allocation3 + $0x19]]
    %v405 = vstv %s404
    %v406 = vmul.f32 %v405, %v83
    %v407 = vmul.f32 %v405, %v84
    %v408 = vadd.f32 %v366, %v406
    %v409 = vadd.f32 %v367, %v407
    %s410 = sld [smem:[#allocation3 + $0x1a]]
    %v411 = vstv %s410
    %v412 = vmul.f32 %v411, %v83
    %v413 = vmul.f32 %v411, %v84
    %v414 = vadd.f32 %v372, %v412
    %v415 = vadd.f32 %v373, %v413
    %s416 = sld [smem:[#allocation3 + $0x1b]]
    %v417 = vstv %s416
    %v418 = vmul.f32 %v417, %v83
    %v419 = vmul.f32 %v417, %v84
    %v420 = vadd.f32 %v378, %v418
    %v421 = vadd.f32 %v379, %v419
    %s422 = sld [smem:[#allocation3 + $0x46]]
    %v423 = vstv %s422
    %v424 = vmul.f32 %v423, %v81
    %v425 = vmul.f32 %v423, %v82
    %v426 = vadd.f32 %v384, %v424
    %v427 = vadd.f32 %v385, %v425
    %s428 = sld [smem:[#allocation3 + $0x47]]
    %v429 = vstv %s428
    %v430 = vmul.f32 %v429, %v81
    %v431 = vmul.f32 %v429, %v82
    %v432 = vadd.f32 %v390, %v430
    %v433 = vadd.f32 %v391, %v431
    %s434 = sld [smem:[#allocation3 + $0x48]]
    %v435 = vstv %s434
    %v436 = vmul.f32 %v435, %v81
    %v437 = vmul.f32 %v435, %v82
    %v438 = vadd.f32 %v396, %v436
    %v439 = vadd.f32 %v397, %v437
    %s440 = sld [smem:[#allocation3 + $0x49]]
    %v441 = vstv %s440
    %v442 = vmul.f32 %v441, %v81
    %v443 = vmul.f32 %v441, %v82
    %v444 = vadd.f32 %v402, %v442
    %v445 = vadd.f32 %v403, %v443
    %s446 = sld [smem:[#allocation3 + $0x4a]]
    %v447 = vstv %s446
    %v448 = vmul.f32 %v447, %v81
    %v449 = vmul.f32 %v447, %v82
    %v450 = vadd.f32 %v408, %v448
    %v451 = vadd.f32 %v409, %v449
    %s452 = sld [smem:[#allocation3 + $0x4b]]
    %v453 = vstv %s452
    %v454 = vmul.f32 %v453, %v81
    %v455 = vmul.f32 %v453, %v82
    %v456 = vadd.f32 %v414, %v454
    %v457 = vadd.f32 %v415, %v455
    %s458 = sld [smem:[#allocation3 + $0x4c]]
    %v459 = vstv %s458
    %v460 = vmul.f32 %v459, %v81
    %v461 = vmul.f32 %v459, %v82
    %v462 = vadd.f32 %v420, %v460
    %v463 = vadd.f32 %v421, %v461
    %v464 = vrot.slane %v83, 1
    %v465 = vrot.slane %v84, 1
    %vm466 = vcmp.lt.s32.totalorder %v44, 7
    %v467 = vsel %vm466, %v464, %v465
    %v468 = vsel %vm466, %v465, %v464
    %vm469 = vcmp.ge.s32.totalorder %v44, 4294967295
    %vm470 = vcmp.ge.s32.totalorder %v45, 4294967295
    %vm471 = vcmp.lt.s32.totalorder %v44, 15
    %vm472 = vcmp.lt.s32.totalorder %v45, 15
    %vm473 = vmand %vm469, %vm471
    %vm474 = vmand %vm470, %vm472
    %v475 = vsel %vm473, %v467, 0.0
    %v476 = vsel %vm474, %v468, 0.0
    %s477 = sld [smem:[#allocation3 + $0x1c]]
    %v478 = vstv %s477
    %v479 = vmul.f32 %v478, %v475
    %v480 = vmul.f32 %v478, %v476
    %v481 = vadd.f32 %v426, %v479
    %v482 = vadd.f32 %v427, %v480
    %s483 = sld [smem:[#allocation3 + $0x1d]]
    %v484 = vstv %s483
    %v485 = vmul.f32 %v484, %v475
    %v486 = vmul.f32 %v484, %v476
    %v487 = vadd.f32 %v432, %v485
    %v488 = vadd.f32 %v433, %v486
    %s489 = sld [smem:[#allocation3 + $0x1e]]
    %v490 = vstv %s489
    %v491 = vmul.f32 %v490, %v475
    %v492 = vmul.f32 %v490, %v476
    %v493 = vadd.f32 %v438, %v491
    %v494 = vadd.f32 %v439, %v492
    %s495 = sld [smem:[#allocation3 + $0x1f]]
    %v496 = vstv %s495
    %v497 = vmul.f32 %v496, %v475
    %v498 = vmul.f32 %v496, %v476
    %v499 = vadd.f32 %v444, %v497
    %v500 = vadd.f32 %v445, %v498
    %s501 = sld [smem:[#allocation3 + $0x20]]
    %v502 = vstv %s501
    %v503 = vmul.f32 %v502, %v475
    %v504 = vmul.f32 %v502, %v476
    %v505 = vadd.f32 %v450, %v503
    %v506 = vadd.f32 %v451, %v504
    %s507 = sld [smem:[#allocation3 + $0x21]]
    %v508 = vstv %s507
    %v509 = vmul.f32 %v508, %v475
    %v510 = vmul.f32 %v508, %v476
    %v511 = vadd.f32 %v456, %v509
    %v512 = vadd.f32 %v457, %v510
    %s513 = sld [smem:[#allocation3 + $0x22]]
    %v514 = vstv %s513
    %v515 = vmul.f32 %v514, %v475
    %v516 = vmul.f32 %v514, %v476
    %v517 = vadd.f32 %v462, %v515
    %v518 = vadd.f32 %v463, %v516
    %v519 = vrot.slane %v81, 1
    %v520 = vrot.slane %v82, 1
    %v521 = vsel %vm466, %v519, %v520
    %v522 = vsel %vm466, %v520, %v519
    %v523 = vsel %vm473, %v521, 0.0
    %v524 = vsel %vm474, %v522, 0.0
    %s525 = sld [smem:[#allocation3 + $0x4d]]
    %v526 = vstv %s525
    %v527 = vmul.f32 %v526, %v523
    %v528 = vmul.f32 %v526, %v524
    %v529 = vadd.f32 %v481, %v527
    %v530 = vadd.f32 %v482, %v528
    %s531 = sld [smem:[#allocation3 + $0x4e]]
    %v532 = vstv %s531
    %v533 = vmul.f32 %v532, %v523
    %v534 = vmul.f32 %v532, %v524
    %v535 = vadd.f32 %v487, %v533
    %v536 = vadd.f32 %v488, %v534
    %s537 = sld [smem:[#allocation3 + $0x4f]]
    %v538 = vstv %s537
    %v539 = vmul.f32 %v538, %v523
    %v540 = vmul.f32 %v538, %v524
    %v541 = vadd.f32 %v493, %v539
    %v542 = vadd.f32 %v494, %v540
    %s543 = sld [smem:[#allocation3 + $0x50]]
    %v544 = vstv %s543
    %v545 = vmul.f32 %v544, %v523
    %v546 = vmul.f32 %v544, %v524
    %v547 = vadd.f32 %v499, %v545
    %v548 = vadd.f32 %v500, %v546
    %s549 = sld [smem:[#allocation3 + $0x51]]
    %v550 = vstv %s549
    %v551 = vmul.f32 %v550, %v523
    %v552 = vmul.f32 %v550, %v524
    %v553 = vadd.f32 %v505, %v551
    %v554 = vadd.f32 %v506, %v552
    %s555 = sld [smem:[#allocation3 + $0x52]]
    %v556 = vstv %s555
    %v557 = vmul.f32 %v556, %v523
    %v558 = vmul.f32 %v556, %v524
    %v559 = vadd.f32 %v511, %v557
    %v560 = vadd.f32 %v512, %v558
    %s561 = sld [smem:[#allocation3 + $0x53]]
    %v562 = vstv %s561
    %v563 = vmul.f32 %v562, %v523
    %v564 = vmul.f32 %v562, %v524
    %v565 = vadd.f32 %v517, %v563
    %v566 = vadd.f32 %v518, %v564
    %v567 = vrot.slane %v83, 2
    %v568 = vrot.slane %v84, 2
    %vm569 = vcmp.lt.s32.totalorder %v44, 6
    %v570 = vsel %vm569, %v567, %v568
    %v571 = vsel %vm569, %v568, %v567
    %vm572 = vcmp.ge.s32.totalorder %v44, 4294967294
    %vm573 = vcmp.ge.s32.totalorder %v45, 4294967294
    %vm574 = vcmp.lt.s32.totalorder %v44, 14
    %vm575 = vcmp.lt.s32.totalorder %v45, 14
    %vm576 = vmand %vm572, %vm574
    %vm577 = vmand %vm573, %vm575
    %v578 = vsel %vm576, %v570, 0.0
    %v579 = vsel %vm577, %v571, 0.0
    %s580 = sld [smem:[#allocation3 + $0x23]]
    %v581 = vstv %s580
    %v582 = vmul.f32 %v581, %v578
    %v583 = vmul.f32 %v581, %v579
    %v584 = vadd.f32 %v529, %v582
    %v585 = vadd.f32 %v530, %v583
    %s586 = sld [smem:[#allocation3 + $0x24]]
    %v587 = vstv %s586
    %v588 = vmul.f32 %v587, %v578
    %v589 = vmul.f32 %v587, %v579
    %v590 = vadd.f32 %v535, %v588
    %v591 = vadd.f32 %v536, %v589
    %s592 = sld [smem:[#allocation3 + $0x25]]
    %v593 = vstv %s592
    %v594 = vmul.f32 %v593, %v578
    %v595 = vmul.f32 %v593, %v579
    %v596 = vadd.f32 %v541, %v594
    %v597 = vadd.f32 %v542, %v595
    %s598 = sld [smem:[#allocation3 + $0x26]]
    %v599 = vstv %s598
    %v600 = vmul.f32 %v599, %v578
    %v601 = vmul.f32 %v599, %v579
    %v602 = vadd.f32 %v547, %v600
    %v603 = vadd.f32 %v548, %v601
    %s604 = sld [smem:[#allocation3 + $0x27]]
    %v605 = vstv %s604
    %v606 = vmul.f32 %v605, %v578
    %v607 = vmul.f32 %v605, %v579
    %v608 = vadd.f32 %v553, %v606
    %v609 = vadd.f32 %v554, %v607
    %s610 = sld [smem:[#allocation3 + $0x28]]
    %v611 = vstv %s610
    %v612 = vmul.f32 %v611, %v578
    %v613 = vmul.f32 %v611, %v579
    %v614 = vadd.f32 %v559, %v612
    %v615 = vadd.f32 %v560, %v613
    %s616 = sld [smem:[#allocation3 + $0x29]]
    %v617 = vstv %s616
    %v618 = vmul.f32 %v617, %v578
    %v619 = vmul.f32 %v617, %v579
    %v620 = vadd.f32 %v565, %v618
    %v621 = vadd.f32 %v566, %v619
    %v622 = vrot.slane %v81, 2
    %v623 = vrot.slane %v82, 2
    %v624 = vsel %vm569, %v622, %v623
    %v625 = vsel %vm569, %v623, %v622
    %v626 = vsel %vm576, %v624, 0.0
    %v627 = vsel %vm577, %v625, 0.0
    %s628 = sld [smem:[#allocation3 + $0x54]]
    %v629 = vstv %s628
    %v630 = vmul.f32 %v629, %v626
    %v631 = vmul.f32 %v629, %v627
    %v632 = vadd.f32 %v584, %v630
    %v633 = vadd.f32 %v585, %v631
    %s634 = sld [smem:[#allocation3 + $0x55]]
    %v635 = vstv %s634
    %v636 = vmul.f32 %v635, %v626
    %v637 = vmul.f32 %v635, %v627
    %v638 = vadd.f32 %v590, %v636
    %v639 = vadd.f32 %v591, %v637
    %s640 = sld [smem:[#allocation3 + $0x56]]
    %v641 = vstv %s640
    %v642 = vmul.f32 %v641, %v626
    %v643 = vmul.f32 %v641, %v627
    %v644 = vadd.f32 %v596, %v642
    %v645 = vadd.f32 %v597, %v643
    %s646 = sld [smem:[#allocation3 + $0x57]]
    %v647 = vstv %s646
    %v648 = vmul.f32 %v647, %v626
    %v649 = vmul.f32 %v647, %v627
    %v650 = vadd.f32 %v602, %v648
    %v651 = vadd.f32 %v603, %v649
    %s652 = sld [smem:[#allocation3 + $0x58]]
    %v653 = vstv %s652
    %v654 = vmul.f32 %v653, %v626
    %v655 = vmul.f32 %v653, %v627
    %v656 = vadd.f32 %v608, %v654
    %v657 = vadd.f32 %v609, %v655
    %s658 = sld [smem:[#allocation3 + $0x59]]
    %v659 = vstv %s658
    %v660 = vmul.f32 %v659, %v626
    %v661 = vmul.f32 %v659, %v627
    %v662 = vadd.f32 %v614, %v660
    %v663 = vadd.f32 %v615, %v661
    %s664 = sld [smem:[#allocation3 + $0x5a]]
    %v665 = vstv %s664
    %v666 = vmul.f32 %v665, %v626
    %v667 = vmul.f32 %v665, %v627
    %v668 = vadd.f32 %v620, %v666
    %v669 = vadd.f32 %v621, %v667
    %v670 = vrot.slane %v83, 3
    %v671 = vrot.slane %v84, 3
    %vm672 = vcmp.lt.s32.totalorder %v44, 5
    %v673 = vsel %vm672, %v670, %v671
    %v674 = vsel %vm672, %v671, %v670
    %vm675 = vcmp.ge.s32.totalorder %v44, 4294967293
    %vm676 = vcmp.ge.s32.totalorder %v45, 4294967293
    %vm677 = vcmp.lt.s32.totalorder %v44, 13
    %vm678 = vcmp.lt.s32.totalorder %v45, 13
    %vm679 = vmand %vm675, %vm677
    %vm680 = vmand %vm676, %vm678
    %v681 = vsel %vm679, %v673, 0.0
    %v682 = vsel %vm680, %v674, 0.0
    %s683 = sld [smem:[#allocation3 + $0x2a]]
    %v684 = vstv %s683
    %v685 = vmul.f32 %v684, %v681
    %v686 = vmul.f32 %v684, %v682
    %v687 = vadd.f32 %v632, %v685
    %v688 = vadd.f32 %v633, %v686
    %s689 = sld [smem:[#allocation3 + $0x2b]]
    %v690 = vstv %s689
    %v691 = vmul.f32 %v690, %v681
    %v692 = vmul.f32 %v690, %v682
    %v693 = vadd.f32 %v638, %v691
    %v694 = vadd.f32 %v639, %v692
    %s695 = sld [smem:[#allocation3 + $0x2c]]
    %v696 = vstv %s695
    %v697 = vmul.f32 %v696, %v681
    %v698 = vmul.f32 %v696, %v682
    %v699 = vadd.f32 %v644, %v697
    %v700 = vadd.f32 %v645, %v698
    %s701 = sld [smem:[#allocation3 + $0x2d]]
    %v702 = vstv %s701
    %v703 = vmul.f32 %v702, %v681
    %v704 = vmul.f32 %v702, %v682
    %v705 = vadd.f32 %v650, %v703
    %v706 = vadd.f32 %v651, %v704
    %s707 = sld [smem:[#allocation3 + $0x2e]]
    %v708 = vstv %s707
    %v709 = vmul.f32 %v708, %v681
    %v710 = vmul.f32 %v708, %v682
    %v711 = vadd.f32 %v656, %v709
    %v712 = vadd.f32 %v657, %v710
    %s713 = sld [smem:[#allocation3 + $0x2f]]
    %v714 = vstv %s713
    %v715 = vmul.f32 %v714, %v681
    %v716 = vmul.f32 %v714, %v682
    %v717 = vadd.f32 %v662, %v715
    %v718 = vadd.f32 %v663, %v716
    %s719 = sld [smem:[#allocation3 + $0x30]]
    %v720 = vstv %s719
    %v721 = vmul.f32 %v720, %v681
    %v722 = vmul.f32 %v720, %v682
    %v723 = vadd.f32 %v668, %v721
    %v724 = vadd.f32 %v669, %v722
    %v725 = vrot.slane %v81, 3
    %v726 = vrot.slane %v82, 3
    %v727 = vsel %vm672, %v725, %v726
    %v728 = vsel %vm672, %v726, %v725
    %v729 = vsel %vm679, %v727, 0.0
    %v730 = vsel %vm680, %v728, 0.0
    %s731 = sld [smem:[#allocation3 + $0x5b]]
    %v732 = vstv %s731
    %v733 = vmul.f32 %v732, %v729
    %v734 = vmul.f32 %v732, %v730
    %v735 = vadd.f32 %v687, %v733
    %v736 = vadd.f32 %v688, %v734
    %s737 = sld [smem:[#allocation3 + $0x5c]]
    %v738 = vstv %s737
    %v739 = vmul.f32 %v738, %v729
    %v740 = vmul.f32 %v738, %v730
    %v741 = vadd.f32 %v693, %v739
    %v742 = vadd.f32 %v694, %v740
    %s743 = sld [smem:[#allocation3 + $0x5d]]
    %v744 = vstv %s743
    %v745 = vmul.f32 %v744, %v729
    %v746 = vmul.f32 %v744, %v730
    %v747 = vadd.f32 %v699, %v745
    %v748 = vadd.f32 %v700, %v746
    %s749 = sld [smem:[#allocation3 + $0x5e]]
    %v750 = vstv %s749
    %v751 = vmul.f32 %v750, %v729
    %v752 = vmul.f32 %v750, %v730
    %v753 = vadd.f32 %v705, %v751
    %v754 = vadd.f32 %v706, %v752
    %s755 = sld [smem:[#allocation3 + $0x5f]]
    %v756 = vstv %s755
    %v757 = vmul.f32 %v756, %v729
    %v758 = vmul.f32 %v756, %v730
    %v759 = vadd.f32 %v711, %v757
    %v760 = vadd.f32 %v712, %v758
    %s761 = sld [smem:[#allocation3 + $0x60]]
    %v762 = vstv %s761
    %v763 = vmul.f32 %v762, %v729
    %v764 = vmul.f32 %v762, %v730
    %v765 = vadd.f32 %v717, %v763
    %v766 = vadd.f32 %v718, %v764
    %s767 = sld [smem:[#allocation3 + $0x61]]
    %v768 = vstv %s767
    %v769 = vmul.f32 %v768, %v729
    %v770 = vmul.f32 %v768, %v730
    %v771 = vadd.f32 %v723, %v769
    %v772 = vadd.f32 %v724, %v770
    %s773 = sld [smem:[#allocation2]]
    %v774 = vstv %s773
    %v775 = vadd.f32 %v753, %v774
    %v776 = vadd.f32 %v754, %v774
    %777 = vrot.lane.b32.xlu0 %v735, 3
    %v778 = vpop.permute.xlu0 %777
    %779 = vrot.lane.b32.xlu0 %v736, 3
    %v780 = vpop.permute.xlu0 %779
    %vm781 = vcmp.ge.s32.totalorder %v59, 3
    %vm782 = vcmp.lt.s32.totalorder %v59, 19
    %vm783 = vmand %vm781, %vm782
    %v784 = vsel %vm783, %v778, 0.0
    %v785 = vsel %vm783, %v780, 0.0
    %v786 = vadd.f32 %v775, %v784
    %v787 = vadd.f32 %v776, %v785
    %788 = vrot.lane.b32.xlu0 %v741, 2
    %v789 = vpop.permute.xlu0 %788
    %790 = vrot.lane.b32.xlu0 %v742, 2
    %v791 = vpop.permute.xlu0 %790
    %vm792 = vcmp.ge.s32.totalorder %v59, 2
    %vm793 = vcmp.lt.s32.totalorder %v59, 18
    %vm794 = vmand %vm792, %vm793
    %v795 = vsel %vm794, %v789, 0.0
    %v796 = vsel %vm794, %v791, 0.0
    %v797 = vadd.f32 %v786, %v795
    %v798 = vadd.f32 %v787, %v796
    %799 = vrot.lane.b32.xlu0 %v747, 1
    %v800 = vpop.permute.xlu0 %799
    %801 = vrot.lane.b32.xlu0 %v748, 1
    %v802 = vpop.permute.xlu0 %801
    %vm803 = vcmp.ge.s32.totalorder %v59, 1
    %vm804 = vcmp.lt.s32.totalorder %v59, 17
    %vm805 = vmand %vm803, %vm804
    %v806 = vsel %vm805, %v800, 0.0
    %v807 = vsel %vm805, %v802, 0.0
    %v808 = vadd.f32 %v797, %v806
    %v809 = vadd.f32 %v798, %v807
    %810 = vrot.lane.b32.xlu0 %v759, 127
    %v811 = vpop.permute.xlu0 %810
    %812 = vrot.lane.b32.xlu0 %v760, 127
    %v813 = vpop.permute.xlu0 %812
    %vm814 = vcmp.ge.s32.totalorder %v59, 4294967295
    %vm815 = vcmp.lt.s32.totalorder %v59, 15
    %vm816 = vmand %vm814, %vm815
    %v817 = vsel %vm816, %v811, 0.0
    %v818 = vsel %vm816, %v813, 0.0
    %v819 = vadd.f32 %v808, %v817
    %v820 = vadd.f32 %v809, %v818
    %821 = vrot.lane.b32.xlu0 %v765, 126
    %v822 = vpop.permute.xlu0 %821
    %823 = vrot.lane.b32.xlu0 %v766, 126
    %v824 = vpop.permute.xlu0 %823
    %vm825 = vcmp.ge.s32.totalorder %v59, 4294967294
    %vm826 = vcmp.lt.s32.totalorder %v59, 14
    %vm827 = vmand %vm825, %vm826
    %v828 = vsel %vm827, %v822, 0.0
    %v829 = vsel %vm827, %v824, 0.0
    %v830 = vadd.f32 %v819, %v828
    %v831 = vadd.f32 %v820, %v829
    %832 = vrot.lane.b32.xlu0 %v771, 125
    %v833 = vpop.permute.xlu0 %832
    %834 = vrot.lane.b32.xlu0 %v772, 125
    %v835 = vpop.permute.xlu0 %834
    %vm836 = vcmp.ge.s32.totalorder %v59, 4294967293
    %vm837 = vcmp.lt.s32.totalorder %v59, 13
    %vm838 = vmand %vm836, %vm837
    %v839 = vsel %vm838, %v833, 0.0
    %v840 = vsel %vm838, %v835, 0.0
    %v841 = vadd.f32 %v830, %v839
    %v842 = vadd.f32 %v831, %v840
    %v843 = vxor.u32 %v841, 2147483648
    %v844 = vxor.u32 %v842, 2147483648
    %v845 = vmul.f32 %v843, 1.442695
    %v846 = vpow.pop %v845
    %v847 = vmul.f32 %v844, 1.442695
    %v848 = vpow.pop %v847
    %v849 = vadd.f32 %v846, 1.0
    %v850 = vadd.f32 %v848, 1.0
    %v851 = vrcp.pop %v849
    %v852 = vmul.f32 1.0, %v851
    %v853 = vrcp.pop %v850
    %v854 = vmul.f32 1.0, %v853
    %855 = vst [vmem:[#allocation8] sm:$0xff] %v852
    %856 = vst [vmem:[#allocation8 + $0x8] sm:$0xff] %v854
    // Predicated region
    $region22: #{tpu_custom_call.1} parent=1 // pred_check
      _
    $region23: #{tpu_custom_call.1} parent=1 // pred_check_branch
      %858 = sbr.rel (0) target = $region25
    $region24: #{tpu_custom_call.1} parent=1 // pred_region
      %s860 = ssub.s32 256, 256
      %861 = vsyncadd [#allocation5], %s860
      %s862 = sshll.u32 [#allocation8], 4
      %s863 = int_to_ptr.vmem [resolvable:$true] %s862
      %868 = dma.vmem_to_hbm [thread:$0]  %s863, 256, %s3, [#allocation5], 128, 128, 8
    $region25: #{tpu_custom_call.1} parent=1 // pred_fallthru
      _
    // Predicated region
    $region26: #{tpu_custom_call.1} parent=1 // pred_check
      _
    $region27: #{tpu_custom_call.1} parent=1 // pred_check_branch
      %870 = sbr.rel (0) target = $region29
    $region28: #{tpu_custom_call.1} parent=1 // pred_region
      %871 = dma.done [#allocation5], 256
    $region29: #{tpu_custom_call.1} parent=1 // pred_fallthru
      _
    %872 = vsyncpa [#allocation4], 1
    %873 = vsyncpa [#allocation5], 1
    %874 = vsyncpa [#allocation6], 1

</llo_original>
